<compile_context>
chip_gen: v5e
topology: v5e:2x2
jax: 0.10.0
libtpu: 0.0.40
codegen_flags: <defaults>
</compile_context>

<pallas_src>
import jax
import jax.numpy as jnp
from jax import lax
from jax.experimental import pallas as pl
from jax.experimental.pallas import tpu as pltpu

EXPANSION = 4


# ----------------------------- fused block kernel ----------------------------
def _make_fused_kernel(H, W):
    """Builds the fused bottleneck kernel for a fixed spatial size H x W."""
    Wp = W + 2                  # padded plane width
    Mp = (H + 2) * Wp           # rows of the flattened zero-padded plane
    c0 = Wp + 1                 # flat index of padded position (1, 1)
    Hi = (H - 1) * Wp + W       # span covering all interior rows of the plane

    def kernel(x_ref, w1_ref, b1_ref, w2_ref, b2_ref, w3_ref, b3_ref,
               o_ref, ypad_ref, z_ref):
        # x_ref : (1, H*W, Cin) f32           o_ref : (1, H*W, Cout) f32
        # w1_ref: (Cin, P)  bf16              b1_ref: (1, P)    f32
        # w2_ref: (9, P, P) bf16              b2_ref: (1, P)    f32
        # w3_ref: (P, Cout) bf16 (scale pre-folded)
        # b3_ref: (1, Cout) f32  (scale pre-folded)
        # ypad_ref: (Mp, P)  bf16 scratch -- relu(conv1 out) on zero-padded plane
        # z_ref   : (H*W, P) bf16 scratch -- relu(conv2 + b2 + identity2)

        # ---- stage 1: y1 = conv1(relu(x))   (1x1 conv == matmul over channels) ----
        xr = jnp.maximum(x_ref[0], 0.0).astype(jnp.bfloat16)               # (H*W, Cin)
        y1 = jnp.dot(xr, w1_ref[...], preferred_element_type=jnp.float32)
        y1 = y1 + b1_ref[...]                                              # identity2 (pre-ReLU), f32

        # ---- stage 2: conv2 = 3x3 conv (pad=1) over relu(y1): 9 plane-wide taps ----
        ypad_ref[...] = jnp.zeros_like(ypad_ref)                           # zero halo
        y1r = jnp.maximum(y1, 0.0).astype(jnp.bfloat16)                    # (H*W, P)
        for h in range(H):                                                 # scatter interior rows
            ypad_ref[pl.ds(c0 + h * Wp, W), :] = y1r[h * W:(h + 1) * W, :]

        yp = ypad_ref[...]                                                 # (Mp, P) bf16
        P = yp.shape[1]
        acc = jnp.zeros((Hi, P), jnp.float32)
        for kh in range(3):
            for kw in range(3):
                tap = jnp.dot(yp, w2_ref[kh * 3 + kw],
                              preferred_element_type=jnp.float32)          # (Mp, P)
                d = (kh - 1) * Wp + (kw - 1)                               # flat shift of this tap
                acc = acc + tap[c0 + d: c0 + d + Hi, :]                    # shift-and-accumulate

        y1b = y1 + b2_ref[...]                                             # bias + identity2 (hoisted)
        for h in range(H):                                                 # gather interior rows
            row = acc[h * Wp: h * Wp + W, :] + y1b[h * W:(h + 1) * W, :]
            z_ref[pl.ds(h * W, W), :] = jnp.maximum(row, 0.0).astype(jnp.bfloat16)

        # ---- stage 3: out = conv3(z) * scale + x   (scale folded into w3/b3) ----
        out = jnp.dot(z_ref[...], w3_ref[...], preferred_element_type=jnp.float32)
        o_ref[0] = out + b3_ref[...] + x_ref[0]

    return kernel


# --------------------------------- wrapper -----------------------------------
def augskip_bottleneck_no_bn(x_nchw, params, stride=1, downsample=None):
    if stride != 1 or downsample is not None:
        # TODO(synk): stride != 1 shortcut (AvgPool2d(1, stride)) / external downsample module.
        raise NotImplementedError("only stride=1, downsample=None supported")
    N, C, H, W = x_nchw.shape
    P = params["w1"].shape[1]
    Cout = params["w3"].shape[1]
    assert C == Cout, "residual add needs inplanes == planes*expansion when downsample is None"

    # NCHW -> flattened NHWC (channels on the lane axis).
    x = jnp.transpose(x_nchw, (0, 2, 3, 1)).astype(jnp.float32).reshape(N, H * W, C)

    # Weight prep: bf16 operands for the MXU, scale folded into conv3, (1, C) bias rows.
    scale = params["scale"].astype(jnp.float32)[0]
    w1 = params["w1"].astype(jnp.bfloat16)                        # (Cin, P)
    b1 = params["b1"].reshape(1, P).astype(jnp.float32)
    w2 = params["w2"].reshape(9, P, P).astype(jnp.bfloat16)       # (3,3,P,P) -> (9,P,P)
    b2 = params["b2"].reshape(1, P).astype(jnp.float32)
    w3 = (params["w3"] * scale).astype(jnp.bfloat16)              # (P, Cout), scale folded
    b3 = (params["b3"] * scale).reshape(1, Cout).astype(jnp.float32)

    Mp = (H + 2) * (W + 2)
    kernel = _make_fused_kernel(H, W)

    out = pl.pallas_call(
        kernel,
        out_shape=jax.ShapeDtypeStruct((N, H * W, Cout), jnp.float32),
        grid=(N,),
        in_specs=[
            pl.BlockSpec((1, H * W, C), lambda n: (n, 0, 0)),     # x (one image per step)
            pl.BlockSpec((C, P), lambda n: (0, 0)),               # w1 (resident across steps)
            pl.BlockSpec((1, P), lambda n: (0, 0)),               # b1
            pl.BlockSpec((9, P, P), lambda n: (0, 0, 0)),         # w2
            pl.BlockSpec((1, P), lambda n: (0, 0)),               # b2
            pl.BlockSpec((P, Cout), lambda n: (0, 0)),            # w3 * scale
            pl.BlockSpec((1, Cout), lambda n: (0, 0)),            # b3 * scale
        ],
        out_specs=pl.BlockSpec((1, H * W, Cout), lambda n: (n, 0, 0)),
        scratch_shapes=[
            pltpu.VMEM((Mp, P), jnp.bfloat16),                    # zero-padded relu(conv1) plane
            pltpu.VMEM((H * W, P), jnp.bfloat16),                 # relu(conv2 + b2 + identity2)
        ],
        compiler_params=pltpu.CompilerParams(
            dimension_semantics=("parallel",),                    # megacore / v7x dual-TC sharding
            vmem_limit_bytes=48 * 1024 * 1024,                    # v7x-safe (64 MiB physical VMEM)
        ),
    )(x, w1, b1, w2, b2, w3, b3)

    out = out.reshape(N, H, W, Cout)
    return jnp.transpose(out, (0, 3, 1, 2))                       # back to NCHW


# --------------------------------- params ------------------------------------
def init_params(key, inplanes, planes):
    keys = jax.random.split(key, 6)
    cexp = planes * EXPANSION

    def winit(k, shape, fan_in):
        return jax.random.normal(k, shape, jnp.float32) / jnp.sqrt(float(fan_in))

    return {
        "w1": winit(keys[0], (inplanes, planes), inplanes),        # conv1 1x1 (Cin, Cout)
        "b1": 0.01 * jax.random.normal(keys[1], (planes,), jnp.float32),
        "w2": winit(keys[2], (3, 3, planes, planes), 9 * planes),  # conv2 3x3 (kh, kw, Cin, Cout)
        "b2": 0.01 * jax.random.normal(keys[3], (planes,), jnp.float32),
        "w3": winit(keys[4], (planes, cexp), planes),              # conv3 1x1 (Cin, Cout)
        "b3": 0.01 * jax.random.normal(keys[5], (cexp,), jnp.float32),
        "scale": jnp.ones((1,), jnp.float32),                      # nn.Parameter(torch.ones(1))
    }


# ------------------------------ pure-JAX reference ---------------------------
def _ref_forward(x, params):
    relu = lambda t: jnp.maximum(t, 0.0)

    def conv1x1(t, w, b):
        y = jnp.einsum("nchw,cd->ndhw", t, w, precision=lax.Precision.HIGHEST)
        return y + b[None, :, None, None]

    def conv3x3(t, w, b):
        w_oihw = jnp.transpose(w, (3, 2, 0, 1))
        y = lax.conv_general_dilated(t, w_oihw, window_strides=(1, 1),
                                     padding=((1, 1), (1, 1)),
                                     dimension_numbers=("NCHW", "OIHW", "NCHW"),
                                     precision=lax.Precision.HIGHEST)
        return y + b[None, :, None, None]

    identity = x
    out = relu(x)
    out = conv1x1(out, params["w1"], params["b1"])
    identity2 = out
    out = relu(out)
    out = conv3x3(out, params["w2"], params["b2"])
    out = out + identity2
    out = relu(out)
    out = conv1x1(out, params["w3"], params["b3"])
    out = out * params["scale"][0]
    out = out + identity
    return out


if __name__ == "__main__":
    key = jax.random.PRNGKey(0)
    kx, kp = jax.random.split(key)

    N, planes, H, W = 2, 8, 8, 8
    inplanes = planes * EXPANSION  # 32, so the final residual add is well-defined

    x = jax.random.normal(kx, (N, inplanes, H, W), jnp.float32)
    params = init_params(kp, inplanes, planes)

    out = augskip_bottleneck_no_bn(x, params, stride=1, downsample=None)
    out = jax.block_until_ready(out)

    ref = _ref_forward(x, params)
    assert out.shape == (N, inplanes, H, W)
    max_err = float(jnp.max(jnp.abs(out - ref)))
    # Tolerance sized for bf16 MXU matmuls (f32 accumulation); structural bugs
    # would produce errors orders of magnitude larger.
    if not bool(jnp.allclose(out, ref, atol=3e-2, rtol=3e-2)):
        raise AssertionError(f"Pallas output mismatch vs reference, max abs err={max_err}")
    print("KERNEL_OK")
</pallas_src>

<mosaic_0001>
module attributes {stable_mosaic.version = 11 : i64} {
  func.func @kernel(%arg0: i32, %arg1: memref<1x64x32xf32, #tpu.memory_space<vmem>>, %arg2: memref<32x8xbf16, #tpu.memory_space<vmem>>, %arg3: memref<1x8xf32, #tpu.memory_space<vmem>>, %arg4: memref<9x8x8xbf16, #tpu.memory_space<vmem>>, %arg5: memref<1x8xf32, #tpu.memory_space<vmem>>, %arg6: memref<8x32xbf16, #tpu.memory_space<vmem>>, %arg7: memref<1x32xf32, #tpu.memory_space<vmem>>, %arg8: memref<1x64x32xf32, #tpu.memory_space<vmem>>, %arg9: memref<100x8xbf16, #tpu.memory_space<vmem>>, %arg10: memref<64x8xbf16, #tpu.memory_space<vmem>>) attributes {dimension_semantics = [#tpu.dimension_semantics<parallel>], iteration_bounds = array<i64: 2>, scalar_prefetch = 0 : i64, scratch_operands = 2 : i64, tpu.core_type = #tpu.core_type<tc>, window_params = [{transform_indices = @transform_0, window_bounds = array<i64: 1, 64, 32>}, {pipeline_mode = #tpu.pipeline_mode<synchronous>, transform_indices = @transform_1, window_bounds = array<i64: 32, 8>}, {pipeline_mode = #tpu.pipeline_mode<synchronous>, transform_indices = @transform_2, window_bounds = array<i64: 1, 8>}, {pipeline_mode = #tpu.pipeline_mode<synchronous>, transform_indices = @transform_3, window_bounds = array<i64: 9, 8, 8>}, {pipeline_mode = #tpu.pipeline_mode<synchronous>, transform_indices = @transform_4, window_bounds = array<i64: 1, 8>}, {pipeline_mode = #tpu.pipeline_mode<synchronous>, transform_indices = @transform_5, window_bounds = array<i64: 8, 32>}, {pipeline_mode = #tpu.pipeline_mode<synchronous>, transform_indices = @transform_6, window_bounds = array<i64: 1, 32>}, {transform_indices = @transform_7, window_bounds = array<i64: 1, 64, 32>}]} {
    %c0 = arith.constant 0 : index
    %c0_0 = arith.constant 0 : index
    %c0_1 = arith.constant 0 : index
    %0 = vector.load %arg1[%c0, %c0_0, %c0_1] : memref<1x64x32xf32, #tpu.memory_space<vmem>>, vector<1x64x32xf32>
    %1 = vector.shape_cast %0 : vector<1x64x32xf32> to vector<64x32xf32>
    %cst = arith.constant 0.000000e+00 : f32
    %2 = vector.broadcast %cst : f32 to vector<64x32xf32>
    %3 = arith.maximumf %1, %2 : vector<64x32xf32>
    %4 = arith.truncf %3 : vector<64x32xf32> to vector<64x32xbf16>
    %c0_2 = arith.constant 0 : index
    %c0_3 = arith.constant 0 : index
    %5 = vector.load %arg2[%c0_2, %c0_3] : memref<32x8xbf16, #tpu.memory_space<vmem>>, vector<32x8xbf16>
    %cst_4 = arith.constant dense<0.000000e+00> : vector<64x8xf32>
    %6 = tpu.matmul %4, %5, %cst_4 {dimension_numbers = #tpu.dot_dimension_numbers<[1], [0], [0], [1], [0, 0, 1, 1], [], []>} : vector<64x32xbf16>, vector<32x8xbf16>, vector<64x8xf32> -> vector<64x8xf32>
    %c0_5 = arith.constant 0 : index
    %c0_6 = arith.constant 0 : index
    %7 = vector.load %arg3[%c0_5, %c0_6] : memref<1x8xf32, #tpu.memory_space<vmem>>, vector<1x8xf32>
    %8 = vector.broadcast %7 : vector<1x8xf32> to vector<64x8xf32>
    %9 = arith.addf %6, %8 : vector<64x8xf32>
    %cst_7 = arith.constant 0.000000e+00 : bf16
    %10 = vector.broadcast %cst_7 : bf16 to vector<100x8xbf16>
    %c0_8 = arith.constant 0 : index
    %c0_9 = arith.constant 0 : index
    %11 = vector.load %arg9[%c0_8, %c0_9] : memref<100x8xbf16, #tpu.memory_space<vmem>>, vector<100x8xbf16>
    tpu.vector_store %arg9[%c0_8, %c0_9], %10 {strides = array<i32>} : memref<100x8xbf16, #tpu.memory_space<vmem>>, vector<100x8xbf16>,
    %cst_10 = arith.constant 0.000000e+00 : f32
    %12 = vector.broadcast %cst_10 : f32 to vector<64x8xf32>
    %13 = arith.maximumf %9, %12 : vector<64x8xf32>
    %14 = arith.truncf %13 : vector<64x8xf32> to vector<64x8xbf16>
    %15 = vector.extract_strided_slice %14 {offsets = [0, 0], sizes = [8, 8], strides = [1, 1]} : vector<64x8xbf16> to vector<8x8xbf16>
    %c11 = arith.constant 11 : index
    %c0_11 = arith.constant 0 : index
    %16 = vector.load %arg9[%c11, %c0_11] : memref<100x8xbf16, #tpu.memory_space<vmem>>, vector<8x8xbf16>
    tpu.vector_store %arg9[%c11, %c0_11], %15 {strides = array<i32>} : memref<100x8xbf16, #tpu.memory_space<vmem>>, vector<8x8xbf16>,
    %17 = vector.extract_strided_slice %14 {offsets = [8, 0], sizes = [8, 8], strides = [1, 1]} : vector<64x8xbf16> to vector<8x8xbf16>
    %c21 = arith.constant 21 : index
    %c0_12 = arith.constant 0 : index
    %18 = vector.load %arg9[%c21, %c0_12] : memref<100x8xbf16, #tpu.memory_space<vmem>>, vector<8x8xbf16>
    tpu.vector_store %arg9[%c21, %c0_12], %17 {strides = array<i32>} : memref<100x8xbf16, #tpu.memory_space<vmem>>, vector<8x8xbf16>,
    %19 = vector.extract_strided_slice %14 {offsets = [16, 0], sizes = [8, 8], strides = [1, 1]} : vector<64x8xbf16> to vector<8x8xbf16>
    %c31 = arith.constant 31 : index
    %c0_13 = arith.constant 0 : index
    %20 = vector.load %arg9[%c31, %c0_13] : memref<100x8xbf16, #tpu.memory_space<vmem>>, vector<8x8xbf16>
    tpu.vector_store %arg9[%c31, %c0_13], %19 {strides = array<i32>} : memref<100x8xbf16, #tpu.memory_space<vmem>>, vector<8x8xbf16>,
    %21 = vector.extract_strided_slice %14 {offsets = [24, 0], sizes = [8, 8], strides = [1, 1]} : vector<64x8xbf16> to vector<8x8xbf16>
    %c41 = arith.constant 41 : index
    %c0_14 = arith.constant 0 : index
    %22 = vector.load %arg9[%c41, %c0_14] : memref<100x8xbf16, #tpu.memory_space<vmem>>, vector<8x8xbf16>
    tpu.vector_store %arg9[%c41, %c0_14], %21 {strides = array<i32>} : memref<100x8xbf16, #tpu.memory_space<vmem>>, vector<8x8xbf16>,
    %23 = vector.extract_strided_slice %14 {offsets = [32, 0], sizes = [8, 8], strides = [1, 1]} : vector<64x8xbf16> to vector<8x8xbf16>
    %c51 = arith.constant 51 : index
    %c0_15 = arith.constant 0 : index
    %24 = vector.load %arg9[%c51, %c0_15] : memref<100x8xbf16, #tpu.memory_space<vmem>>, vector<8x8xbf16>
    tpu.vector_store %arg9[%c51, %c0_15], %23 {strides = array<i32>} : memref<100x8xbf16, #tpu.memory_space<vmem>>, vector<8x8xbf16>,
    %25 = vector.extract_strided_slice %14 {offsets = [40, 0], sizes = [8, 8], strides = [1, 1]} : vector<64x8xbf16> to vector<8x8xbf16>
    %c61 = arith.constant 61 : index
    %c0_16 = arith.constant 0 : index
    %26 = vector.load %arg9[%c61, %c0_16] : memref<100x8xbf16, #tpu.memory_space<vmem>>, vector<8x8xbf16>
    tpu.vector_store %arg9[%c61, %c0_16], %25 {strides = array<i32>} : memref<100x8xbf16, #tpu.memory_space<vmem>>, vector<8x8xbf16>,
    %27 = vector.extract_strided_slice %14 {offsets = [48, 0], sizes = [8, 8], strides = [1, 1]} : vector<64x8xbf16> to vector<8x8xbf16>
    %c71 = arith.constant 71 : index
    %c0_17 = arith.constant 0 : index
    %28 = vector.load %arg9[%c71, %c0_17] : memref<100x8xbf16, #tpu.memory_space<vmem>>, vector<8x8xbf16>
    tpu.vector_store %arg9[%c71, %c0_17], %27 {strides = array<i32>} : memref<100x8xbf16, #tpu.memory_space<vmem>>, vector<8x8xbf16>,
    %29 = vector.extract_strided_slice %14 {offsets = [56, 0], sizes = [8, 8], strides = [1, 1]} : vector<64x8xbf16> to vector<8x8xbf16>
    %c81 = arith.constant 81 : index
    %c0_18 = arith.constant 0 : index
    %30 = vector.load %arg9[%c81, %c0_18] : memref<100x8xbf16, #tpu.memory_space<vmem>>, vector<8x8xbf16>
    tpu.vector_store %arg9[%c81, %c0_18], %29 {strides = array<i32>} : memref<100x8xbf16, #tpu.memory_space<vmem>>, vector<8x8xbf16>,
    %c0_19 = arith.constant 0 : index
    %c0_20 = arith.constant 0 : index
    %31 = vector.load %arg9[%c0_19, %c0_20] : memref<100x8xbf16, #tpu.memory_space<vmem>>, vector<100x8xbf16>
    %cst_21 = arith.constant 0.000000e+00 : f32
    %32 = vector.broadcast %cst_21 : f32 to vector<78x8xf32>
    %c0_22 = arith.constant 0 : index
    %c0_23 = arith.constant 0 : index
    %c0_24 = arith.constant 0 : index
    %33 = vector.load %arg4[%c0_22, %c0_23, %c0_24] : memref<9x8x8xbf16, #tpu.memory_space<vmem>>, vector<1x8x8xbf16>
    %34 = vector.shape_cast %33 : vector<1x8x8xbf16> to vector<8x8xbf16>
    %cst_25 = arith.constant dense<0.000000e+00> : vector<100x8xf32>
    %35 = tpu.matmul %31, %34, %cst_25 {dimension_numbers = #tpu.dot_dimension_numbers<[1], [0], [0], [1], [0, 0, 1, 1], [], []>} : vector<100x8xbf16>, vector<8x8xbf16>, vector<100x8xf32> -> vector<100x8xf32>
    %36 = vector.extract_strided_slice %35 {offsets = [0, 0], sizes = [78, 8], strides = [1, 1]} : vector<100x8xf32> to vector<78x8xf32>
    %37 = arith.addf %32, %36 : vector<78x8xf32>
    %c1 = arith.constant 1 : index
    %c0_26 = arith.constant 0 : index
    %c0_27 = arith.constant 0 : index
    %38 = vector.load %arg4[%c1, %c0_26, %c0_27] : memref<9x8x8xbf16, #tpu.memory_space<vmem>>, vector<1x8x8xbf16>
    %39 = vector.shape_cast %38 : vector<1x8x8xbf16> to vector<8x8xbf16>
    %cst_28 = arith.constant dense<0.000000e+00> : vector<100x8xf32>
    %40 = tpu.matmul %31, %39, %cst_28 {dimension_numbers = #tpu.dot_dimension_numbers<[1], [0], [0], [1], [0, 0, 1, 1], [], []>} : vector<100x8xbf16>, vector<8x8xbf16>, vector<100x8xf32> -> vector<100x8xf32>
    %41 = vector.extract_strided_slice %40 {offsets = [1, 0], sizes = [78, 8], strides = [1, 1]} : vector<100x8xf32> to vector<78x8xf32>
    %42 = arith.addf %37, %41 : vector<78x8xf32>
    %c2 = arith.constant 2 : index
    %c0_29 = arith.constant 0 : index
    %c0_30 = arith.constant 0 : index
    %43 = vector.load %arg4[%c2, %c0_29, %c0_30] : memref<9x8x8xbf16, #tpu.memory_space<vmem>>, vector<1x8x8xbf16>
    %44 = vector.shape_cast %43 : vector<1x8x8xbf16> to vector<8x8xbf16>
    %cst_31 = arith.constant dense<0.000000e+00> : vector<100x8xf32>
    %45 = tpu.matmul %31, %44, %cst_31 {dimension_numbers = #tpu.dot_dimension_numbers<[1], [0], [0], [1], [0, 0, 1, 1], [], []>} : vector<100x8xbf16>, vector<8x8xbf16>, vector<100x8xf32> -> vector<100x8xf32>
    %46 = vector.extract_strided_slice %45 {offsets = [2, 0], sizes = [78, 8], strides = [1, 1]} : vector<100x8xf32> to vector<78x8xf32>
    %47 = arith.addf %42, %46 : vector<78x8xf32>
    %c3 = arith.constant 3 : index
    %c0_32 = arith.constant 0 : index
    %c0_33 = arith.constant 0 : index
    %48 = vector.load %arg4[%c3, %c0_32, %c0_33] : memref<9x8x8xbf16, #tpu.memory_space<vmem>>, vector<1x8x8xbf16>
    %49 = vector.shape_cast %48 : vector<1x8x8xbf16> to vector<8x8xbf16>
    %cst_34 = arith.constant dense<0.000000e+00> : vector<100x8xf32>
    %50 = tpu.matmul %31, %49, %cst_34 {dimension_numbers = #tpu.dot_dimension_numbers<[1], [0], [0], [1], [0, 0, 1, 1], [], []>} : vector<100x8xbf16>, vector<8x8xbf16>, vector<100x8xf32> -> vector<100x8xf32>
    %51 = vector.extract_strided_slice %50 {offsets = [10, 0], sizes = [78, 8], strides = [1, 1]} : vector<100x8xf32> to vector<78x8xf32>
    %52 = arith.addf %47, %51 : vector<78x8xf32>
    %c4 = arith.constant 4 : index
    %c0_35 = arith.constant 0 : index
    %c0_36 = arith.constant 0 : index
    %53 = vector.load %arg4[%c4, %c0_35, %c0_36] : memref<9x8x8xbf16, #tpu.memory_space<vmem>>, vector<1x8x8xbf16>
    %54 = vector.shape_cast %53 : vector<1x8x8xbf16> to vector<8x8xbf16>
    %cst_37 = arith.constant dense<0.000000e+00> : vector<100x8xf32>
    %55 = tpu.matmul %31, %54, %cst_37 {dimension_numbers = #tpu.dot_dimension_numbers<[1], [0], [0], [1], [0, 0, 1, 1], [], []>} : vector<100x8xbf16>, vector<8x8xbf16>, vector<100x8xf32> -> vector<100x8xf32>
    %56 = vector.extract_strided_slice %55 {offsets = [11, 0], sizes = [78, 8], strides = [1, 1]} : vector<100x8xf32> to vector<78x8xf32>
    %57 = arith.addf %52, %56 : vector<78x8xf32>
    %c5 = arith.constant 5 : index
    %c0_38 = arith.constant 0 : index
    %c0_39 = arith.constant 0 : index
    %58 = vector.load %arg4[%c5, %c0_38, %c0_39] : memref<9x8x8xbf16, #tpu.memory_space<vmem>>, vector<1x8x8xbf16>
    %59 = vector.shape_cast %58 : vector<1x8x8xbf16> to vector<8x8xbf16>
    %cst_40 = arith.constant dense<0.000000e+00> : vector<100x8xf32>
    %60 = tpu.matmul %31, %59, %cst_40 {dimension_numbers = #tpu.dot_dimension_numbers<[1], [0], [0], [1], [0, 0, 1, 1], [], []>} : vector<100x8xbf16>, vector<8x8xbf16>, vector<100x8xf32> -> vector<100x8xf32>
    %61 = vector.extract_strided_slice %60 {offsets = [12, 0], sizes = [78, 8], strides = [1, 1]} : vector<100x8xf32> to vector<78x8xf32>
    %62 = arith.addf %57, %61 : vector<78x8xf32>
    %c6 = arith.constant 6 : index
    %c0_41 = arith.constant 0 : index
    %c0_42 = arith.constant 0 : index
    %63 = vector.load %arg4[%c6, %c0_41, %c0_42] : memref<9x8x8xbf16, #tpu.memory_space<vmem>>, vector<1x8x8xbf16>
    %64 = vector.shape_cast %63 : vector<1x8x8xbf16> to vector<8x8xbf16>
    %cst_43 = arith.constant dense<0.000000e+00> : vector<100x8xf32>
    %65 = tpu.matmul %31, %64, %cst_43 {dimension_numbers = #tpu.dot_dimension_numbers<[1], [0], [0], [1], [0, 0, 1, 1], [], []>} : vector<100x8xbf16>, vector<8x8xbf16>, vector<100x8xf32> -> vector<100x8xf32>
    %66 = vector.extract_strided_slice %65 {offsets = [20, 0], sizes = [78, 8], strides = [1, 1]} : vector<100x8xf32> to vector<78x8xf32>
    %67 = arith.addf %62, %66 : vector<78x8xf32>
    %c7 = arith.constant 7 : index
    %c0_44 = arith.constant 0 : index
    %c0_45 = arith.constant 0 : index
    %68 = vector.load %arg4[%c7, %c0_44, %c0_45] : memref<9x8x8xbf16, #tpu.memory_space<vmem>>, vector<1x8x8xbf16>
    %69 = vector.shape_cast %68 : vector<1x8x8xbf16> to vector<8x8xbf16>
    %cst_46 = arith.constant dense<0.000000e+00> : vector<100x8xf32>
    %70 = tpu.matmul %31, %69, %cst_46 {dimension_numbers = #tpu.dot_dimension_numbers<[1], [0], [0], [1], [0, 0, 1, 1], [], []>} : vector<100x8xbf16>, vector<8x8xbf16>, vector<100x8xf32> -> vector<100x8xf32>
    %71 = vector.extract_strided_slice %70 {offsets = [21, 0], sizes = [78, 8], strides = [1, 1]} : vector<100x8xf32> to vector<78x8xf32>
    %72 = arith.addf %67, %71 : vector<78x8xf32>
    %c8 = arith.constant 8 : index
    %c0_47 = arith.constant 0 : index
    %c0_48 = arith.constant 0 : index
    %73 = vector.load %arg4[%c8, %c0_47, %c0_48] : memref<9x8x8xbf16, #tpu.memory_space<vmem>>, vector<1x8x8xbf16>
    %74 = vector.shape_cast %73 : vector<1x8x8xbf16> to vector<8x8xbf16>
    %cst_49 = arith.constant dense<0.000000e+00> : vector<100x8xf32>
    %75 = tpu.matmul %31, %74, %cst_49 {dimension_numbers = #tpu.dot_dimension_numbers<[1], [0], [0], [1], [0, 0, 1, 1], [], []>} : vector<100x8xbf16>, vector<8x8xbf16>, vector<100x8xf32> -> vector<100x8xf32>
    %76 = vector.extract_strided_slice %75 {offsets = [22, 0], sizes = [78, 8], strides = [1, 1]} : vector<100x8xf32> to vector<78x8xf32>
    %77 = arith.addf %72, %76 : vector<78x8xf32>
    %c0_50 = arith.constant 0 : index
    %c0_51 = arith.constant 0 : index
    %78 = vector.load %arg5[%c0_50, %c0_51] : memref<1x8xf32, #tpu.memory_space<vmem>>, vector<1x8xf32>
    %79 = vector.broadcast %78 : vector<1x8xf32> to vector<64x8xf32>
    %80 = arith.addf %9, %79 : vector<64x8xf32>
    %81 = vector.extract_strided_slice %77 {offsets = [0, 0], sizes = [8, 8], strides = [1, 1]} : vector<78x8xf32> to vector<8x8xf32>
    %82 = vector.extract_strided_slice %80 {offsets = [0, 0], sizes = [8, 8], strides = [1, 1]} : vector<64x8xf32> to vector<8x8xf32>
    %83 = arith.addf %81, %82 : vector<8x8xf32>
    %cst_52 = arith.constant 0.000000e+00 : f32
    %84 = vector.broadcast %cst_52 : f32 to vector<8x8xf32>
    %85 = arith.maximumf %83, %84 : vector<8x8xf32>
    %86 = arith.truncf %85 : vector<8x8xf32> to vector<8x8xbf16>
    %c0_53 = arith.constant 0 : index
    %c0_54 = arith.constant 0 : index
    %87 = vector.load %arg10[%c0_53, %c0_54] : memref<64x8xbf16, #tpu.memory_space<vmem>>, vector<8x8xbf16>
    tpu.vector_store %arg10[%c0_53, %c0_54], %86 {strides = array<i32>} : memref<64x8xbf16, #tpu.memory_space<vmem>>, vector<8x8xbf16>,
    %88 = vector.extract_strided_slice %77 {offsets = [10, 0], sizes = [8, 8], strides = [1, 1]} : vector<78x8xf32> to vector<8x8xf32>
    %89 = vector.extract_strided_slice %80 {offsets = [8, 0], sizes = [8, 8], strides = [1, 1]} : vector<64x8xf32> to vector<8x8xf32>
    %90 = arith.addf %88, %89 : vector<8x8xf32>
    %cst_55 = arith.constant 0.000000e+00 : f32
    %91 = vector.broadcast %cst_55 : f32 to vector<8x8xf32>
    %92 = arith.maximumf %90, %91 : vector<8x8xf32>
    %93 = arith.truncf %92 : vector<8x8xf32> to vector<8x8xbf16>
    %c8_56 = arith.constant 8 : index
    %c0_57 = arith.constant 0 : index
    %94 = vector.load %arg10[%c8_56, %c0_57] : memref<64x8xbf16, #tpu.memory_space<vmem>>, vector<8x8xbf16>
    tpu.vector_store %arg10[%c8_56, %c0_57], %93 {strides = array<i32>} : memref<64x8xbf16, #tpu.memory_space<vmem>>, vector<8x8xbf16>,
    %95 = vector.extract_strided_slice %77 {offsets = [20, 0], sizes = [8, 8], strides = [1, 1]} : vector<78x8xf32> to vector<8x8xf32>
    %96 = vector.extract_strided_slice %80 {offsets = [16, 0], sizes = [8, 8], strides = [1, 1]} : vector<64x8xf32> to vector<8x8xf32>
    %97 = arith.addf %95, %96 : vector<8x8xf32>
    %cst_58 = arith.constant 0.000000e+00 : f32
    %98 = vector.broadcast %cst_58 : f32 to vector<8x8xf32>
    %99 = arith.maximumf %97, %98 : vector<8x8xf32>
    %100 = arith.truncf %99 : vector<8x8xf32> to vector<8x8xbf16>
    %c16 = arith.constant 16 : index
    %c0_59 = arith.constant 0 : index
    %101 = vector.load %arg10[%c16, %c0_59] : memref<64x8xbf16, #tpu.memory_space<vmem>>, vector<8x8xbf16>
    tpu.vector_store %arg10[%c16, %c0_59], %100 {strides = array<i32>} : memref<64x8xbf16, #tpu.memory_space<vmem>>, vector<8x8xbf16>,
    %102 = vector.extract_strided_slice %77 {offsets = [30, 0], sizes = [8, 8], strides = [1, 1]} : vector<78x8xf32> to vector<8x8xf32>
    %103 = vector.extract_strided_slice %80 {offsets = [24, 0], sizes = [8, 8], strides = [1, 1]} : vector<64x8xf32> to vector<8x8xf32>
    %104 = arith.addf %102, %103 : vector<8x8xf32>
    %cst_60 = arith.constant 0.000000e+00 : f32
    %105 = vector.broadcast %cst_60 : f32 to vector<8x8xf32>
    %106 = arith.maximumf %104, %105 : vector<8x8xf32>
    %107 = arith.truncf %106 : vector<8x8xf32> to vector<8x8xbf16>
    %c24 = arith.constant 24 : index
    %c0_61 = arith.constant 0 : index
    %108 = vector.load %arg10[%c24, %c0_61] : memref<64x8xbf16, #tpu.memory_space<vmem>>, vector<8x8xbf16>
    tpu.vector_store %arg10[%c24, %c0_61], %107 {strides = array<i32>} : memref<64x8xbf16, #tpu.memory_space<vmem>>, vector<8x8xbf16>,
    %109 = vector.extract_strided_slice %77 {offsets = [40, 0], sizes = [8, 8], strides = [1, 1]} : vector<78x8xf32> to vector<8x8xf32>
    %110 = vector.extract_strided_slice %80 {offsets = [32, 0], sizes = [8, 8], strides = [1, 1]} : vector<64x8xf32> to vector<8x8xf32>
    %111 = arith.addf %109, %110 : vector<8x8xf32>
    %cst_62 = arith.constant 0.000000e+00 : f32
    %112 = vector.broadcast %cst_62 : f32 to vector<8x8xf32>
    %113 = arith.maximumf %111, %112 : vector<8x8xf32>
    %114 = arith.truncf %113 : vector<8x8xf32> to vector<8x8xbf16>
    %c32 = arith.constant 32 : index
    %c0_63 = arith.constant 0 : index
    %115 = vector.load %arg10[%c32, %c0_63] : memref<64x8xbf16, #tpu.memory_space<vmem>>, vector<8x8xbf16>
    tpu.vector_store %arg10[%c32, %c0_63], %114 {strides = array<i32>} : memref<64x8xbf16, #tpu.memory_space<vmem>>, vector<8x8xbf16>,
    %116 = vector.extract_strided_slice %77 {offsets = [50, 0], sizes = [8, 8], strides = [1, 1]} : vector<78x8xf32> to vector<8x8xf32>
    %117 = vector.extract_strided_slice %80 {offsets = [40, 0], sizes = [8, 8], strides = [1, 1]} : vector<64x8xf32> to vector<8x8xf32>
    %118 = arith.addf %116, %117 : vector<8x8xf32>
    %cst_64 = arith.constant 0.000000e+00 : f32
    %119 = vector.broadcast %cst_64 : f32 to vector<8x8xf32>
    %120 = arith.maximumf %118, %119 : vector<8x8xf32>
    %121 = arith.truncf %120 : vector<8x8xf32> to vector<8x8xbf16>
    %c40 = arith.constant 40 : index
    %c0_65 = arith.constant 0 : index
    %122 = vector.load %arg10[%c40, %c0_65] : memref<64x8xbf16, #tpu.memory_space<vmem>>, vector<8x8xbf16>
    tpu.vector_store %arg10[%c40, %c0_65], %121 {strides = array<i32>} : memref<64x8xbf16, #tpu.memory_space<vmem>>, vector<8x8xbf16>,
    %123 = vector.extract_strided_slice %77 {offsets = [60, 0], sizes = [8, 8], strides = [1, 1]} : vector<78x8xf32> to vector<8x8xf32>
    %124 = vector.extract_strided_slice %80 {offsets = [48, 0], sizes = [8, 8], strides = [1, 1]} : vector<64x8xf32> to vector<8x8xf32>
    %125 = arith.addf %123, %124 : vector<8x8xf32>
    %cst_66 = arith.constant 0.000000e+00 : f32
    %126 = vector.broadcast %cst_66 : f32 to vector<8x8xf32>
    %127 = arith.maximumf %125, %126 : vector<8x8xf32>
    %128 = arith.truncf %127 : vector<8x8xf32> to vector<8x8xbf16>
    %c48 = arith.constant 48 : index
    %c0_67 = arith.constant 0 : index
    %129 = vector.load %arg10[%c48, %c0_67] : memref<64x8xbf16, #tpu.memory_space<vmem>>, vector<8x8xbf16>
    tpu.vector_store %arg10[%c48, %c0_67], %128 {strides = array<i32>} : memref<64x8xbf16, #tpu.memory_space<vmem>>, vector<8x8xbf16>,
    %130 = vector.extract_strided_slice %77 {offsets = [70, 0], sizes = [8, 8], strides = [1, 1]} : vector<78x8xf32> to vector<8x8xf32>
    %131 = vector.extract_strided_slice %80 {offsets = [56, 0], sizes = [8, 8], strides = [1, 1]} : vector<64x8xf32> to vector<8x8xf32>
    %132 = arith.addf %130, %131 : vector<8x8xf32>
    %cst_68 = arith.constant 0.000000e+00 : f32
    %133 = vector.broadcast %cst_68 : f32 to vector<8x8xf32>
    %134 = arith.maximumf %132, %133 : vector<8x8xf32>
    %135 = arith.truncf %134 : vector<8x8xf32> to vector<8x8xbf16>
    %c56 = arith.constant 56 : index
    %c0_69 = arith.constant 0 : index
    %136 = vector.load %arg10[%c56, %c0_69] : memref<64x8xbf16, #tpu.memory_space<vmem>>, vector<8x8xbf16>
    tpu.vector_store %arg10[%c56, %c0_69], %135 {strides = array<i32>} : memref<64x8xbf16, #tpu.memory_space<vmem>>, vector<8x8xbf16>,
    %c0_70 = arith.constant 0 : index
    %c0_71 = arith.constant 0 : index
    %137 = vector.load %arg10[%c0_70, %c0_71] : memref<64x8xbf16, #tpu.memory_space<vmem>>, vector<64x8xbf16>
    %c0_72 = arith.constant 0 : index
    %c0_73 = arith.constant 0 : index
    %138 = vector.load %arg6[%c0_72, %c0_73] : memref<8x32xbf16, #tpu.memory_space<vmem>>, vector<8x32xbf16>
    %cst_74 = arith.constant dense<0.000000e+00> : vector<64x32xf32>
    %139 = tpu.matmul %137, %138, %cst_74 {dimension_numbers = #tpu.dot_dimension_numbers<[1], [0], [0], [1], [0, 0, 1, 1], [], []>} : vector<64x8xbf16>, vector<8x32xbf16>, vector<64x32xf32> -> vector<64x32xf32>
    %c0_75 = arith.constant 0 : index
    %c0_76 = arith.constant 0 : index
    %140 = vector.load %arg7[%c0_75, %c0_76] : memref<1x32xf32, #tpu.memory_space<vmem>>, vector<1x32xf32>
    %141 = vector.broadcast %140 : vector<1x32xf32> to vector<64x32xf32>
    %142 = arith.addf %139, %141 : vector<64x32xf32>
    %c0_77 = arith.constant 0 : index
    %c0_78 = arith.constant 0 : index
    %c0_79 = arith.constant 0 : index
    %143 = vector.load %arg1[%c0_77, %c0_78, %c0_79] : memref<1x64x32xf32, #tpu.memory_space<vmem>>, vector<1x64x32xf32>
    %144 = vector.shape_cast %143 : vector<1x64x32xf32> to vector<64x32xf32>
    %145 = arith.addf %142, %144 : vector<64x32xf32>
    %c0_80 = arith.constant 0 : index
    %c0_81 = arith.constant 0 : index
    %c0_82 = arith.constant 0 : index
    %146 = vector.load %arg8[%c0_80, %c0_81, %c0_82] : memref<1x64x32xf32, #tpu.memory_space<vmem>>, vector<1x64x32xf32>
    %147 = vector.shape_cast %146 : vector<1x64x32xf32> to vector<64x32xf32>
    %148 = vector.shape_cast %145 : vector<64x32xf32> to vector<1x64x32xf32>
    tpu.vector_store %arg8[%c0_80, %c0_81, %c0_82], %148 {strides = array<i32>} : memref<1x64x32xf32, #tpu.memory_space<vmem>>, vector<1x64x32xf32>,
    return
  }
  func.func @transform_0(%arg0: i32) -> (i32, i32, i32) {
    %c0_i32 = arith.constant 0 : i32
    %c0_i32_0 = arith.constant 0 : i32
    %c0_i32_1 = arith.constant 0 : i32
    return %arg0, %c0_i32, %c0_i32_0 : i32, i32, i32
  }
  func.func @transform_1(%arg0: i32) -> (i32, i32) {
    %c0_i32 = arith.constant 0 : i32
    %c0_i32_0 = arith.constant 0 : i32
    %c0_i32_1 = arith.constant 0 : i32
    return %c0_i32, %c0_i32_0 : i32, i32
  }
  func.func @transform_2(%arg0: i32) -> (i32, i32) {
    %c0_i32 = arith.constant 0 : i32
    %c0_i32_0 = arith.constant 0 : i32
    %c0_i32_1 = arith.constant 0 : i32
    return %c0_i32, %c0_i32_0 : i32, i32
  }
  func.func @transform_3(%arg0: i32) -> (i32, i32, i32) {
    %c0_i32 = arith.constant 0 : i32
    %c0_i32_0 = arith.constant 0 : i32
    %c0_i32_1 = arith.constant 0 : i32
    %c0_i32_2 = arith.constant 0 : i32
    return %c0_i32, %c0_i32_0, %c0_i32_1 : i32, i32, i32
  }
  func.func @transform_4(%arg0: i32) -> (i32, i32) {
    %c0_i32 = arith.constant 0 : i32
    %c0_i32_0 = arith.constant 0 : i32
    %c0_i32_1 = arith.constant 0 : i32
    return %c0_i32, %c0_i32_0 : i32, i32
  }
  func.func @transform_5(%arg0: i32) -> (i32, i32) {
    %c0_i32 = arith.constant 0 : i32
    %c0_i32_0 = arith.constant 0 : i32
    %c0_i32_1 = arith.constant 0 : i32
    return %c0_i32, %c0_i32_0 : i32, i32
  }
  func.func @transform_6(%arg0: i32) -> (i32, i32) {
    %c0_i32 = arith.constant 0 : i32
    %c0_i32_0 = arith.constant 0 : i32
    %c0_i32_1 = arith.constant 0 : i32
    return %c0_i32, %c0_i32_0 : i32, i32
  }
  func.func @transform_7(%arg0: i32) -> (i32, i32, i32) {
    %c0_i32 = arith.constant 0 : i32
    %c0_i32_0 = arith.constant 0 : i32
    %c0_i32_1 = arith.constant 0 : i32
    return %arg0, %c0_i32, %c0_i32_0 : i32, i32, i32
  }
}

</mosaic_0001>

<llo_original>
// kernel: tpu_custom_call.1
$region0: #{tpu_custom_call.1}
  #allocation0 [shape = 'u32[]', space=smem, size = 0x4, offset = 0x4, fixed_abs, tag = 'smem constant byte address 0x4 - core index']
  #allocation1 [shape = 'u32[72,128]{1,0:T(1,128)}', space=vmem, size = 0x9000, scoped, tag = 'internal scratch']
  #allocation2 [shape = 'bf16[100,8]{1,0:T(8,128)(2,1)}', space=vmem, size = 0x6800, scoped, tag = 'scratch operand']
  #allocation3 [shape = 'bf16[64,8]{1,0:T(8,128)(2,1)}', space=vmem, size = 0x4000, scoped, tag = 'scratch operand']
  %s0 = inlined_call_operand.vmem [shape: f32[2,64,32], index: 0, kind: input, shape index: {}]
  %s1 = inlined_call_operand.vmem [shape: bf16[32,8], index: 1, kind: input, shape index: {}]
  %s2 = inlined_call_operand.vmem [shape: f32[1,8], index: 2, kind: input, shape index: {}]
  %s3 = inlined_call_operand.vmem [shape: bf16[9,8,8], index: 3, kind: input, shape index: {}]
  %s4 = inlined_call_operand.vmem [shape: f32[1,8], index: 4, kind: input, shape index: {}]
  %s5 = inlined_call_operand.vmem [shape: bf16[8,32], index: 5, kind: input, shape index: {}]
  %s6 = inlined_call_operand.vmem [shape: f32[1,32], index: 6, kind: input, shape index: {}]
  %s7 = inlined_call_operand.vmem [shape: f32[2,64,32], index: 7, kind: output, shape index: {}]
  %s8 = sld [smem:[#allocation0]]
  $region61: #{tpu_custom_call.1} parent=0
    _
  %s10 = ssub.s32 1, %s8
  %s11 = scalar_select 0, %s10, %s8
  loop: start=0, step=1, limit=4
  $region2: #{tpu_custom_call.1} parent=0 // loop_pre_header
    _
  $region3: #{tpu_custom_call.1} parent=0 // loop_header
    %s13 = sphi 0, %s17
    %p14 = scmp.ge.s32.totalorder %s13, 4
    %s23 = sphi 0, %s25
    %s26 = sphi 0, %s23
    %s27 = sphi 0, %s26
    %s43 = sphi 0, %s27
    %s47 = sphi 0, %s47
    %s49 = sphi 0, %s47
    %s50 = sphi 0, %s49
    %s64 = sphi 0, %s50
    %s68 = sphi 0, %s68
    %s70 = sphi 0, %s68
    %s71 = sphi 0, %s70
    %s85 = sphi 0, %s71
    %s89 = sphi 0, %s89
    %s91 = sphi 0, %s89
    %s92 = sphi 0, %s91
    %s106 = sphi 0, %s92
    %s110 = sphi 0, %s110
    %s112 = sphi 0, %s110
    %s113 = sphi 0, %s112
    %s127 = sphi 0, %s113
    %s131 = sphi 0, %s131
    %s133 = sphi 0, %s131
    %s134 = sphi 0, %s133
    %s148 = sphi 0, %s134
    %s152 = sphi 0, %s152
    %s154 = sphi 0, %s152
    %s155 = sphi 0, %s154
    %s169 = sphi 0, %s155
    %s175 = sphi 0, %s177
    %s178 = sphi 0, %s175
    %s179 = sphi 0, %s178
    %s195 = sphi 0, %s179
  $region4: #{tpu_custom_call.1} parent=0 // loop_header_branch
    %16 = sbr.rel (%p14) target = $region8
  $region5: #{tpu_custom_call.1} parent=0 // loop_body
    %s18 = ssub.s32 %s13, 1
    %s19 = ssub.s32 %s13, 2
    %s20 = sadd.s32 %s13, 1
    %s21 = ssub.s32 %s13, %s20
    %p22 = scmp.eq.s32.totalorder %s21, 0
    %s24 = sadd.s32 %s23, 1
    %s25 = scalar_select %p22, %s23, %s24
    %p28 = pneg %p22
    %p29 = scmp.eq.s32.totalorder %s13, 1
    %p30 = por %p28, %p29
    %p31 = scmp.ne.s32.totalorder %s23, %s26
    %p32 = scmp.eq.s32.totalorder %s13, 0
    %p33 = por %p31, %p32
    %p34 = scmp.ne.s32.totalorder %s23, %s26
    %p35 = scmp.eq.s32.totalorder %s18, 1
    %p36 = por %p34, %p35
    %p37 = scmp.ne.s32.totalorder %s26, %s27
    %p38 = scmp.eq.s32.totalorder %s18, 0
    %p39 = por %p37, %p38
    %p40 = scmp.ne.s32.totalorder %s26, %s27
    %p41 = scmp.eq.s32.totalorder %s19, 1
    %p42 = por %p40, %p41
    %p44 = scmp.ne.s32.totalorder %s27, %s43
    %p45 = scmp.eq.s32.totalorder %s19, 0
    %p46 = por %p44, %p45
    %s48 = sadd.s32 %s47, 1
    %p51 = scmp.eq.s32.totalorder %s13, 1
    %p52 = scmp.ne.s32.totalorder %s47, %s49
    %p53 = scmp.eq.s32.totalorder %s13, 0
    %p54 = por %p52, %p53
    %p55 = scmp.ne.s32.totalorder %s47, %s49
    %p56 = scmp.eq.s32.totalorder %s18, 1
    %p57 = por %p55, %p56
    %p58 = scmp.ne.s32.totalorder %s49, %s50
    %p59 = scmp.eq.s32.totalorder %s18, 0
    %p60 = por %p58, %p59
    %p61 = scmp.ne.s32.totalorder %s49, %s50
    %p62 = scmp.eq.s32.totalorder %s19, 1
    %p63 = por %p61, %p62
    %p65 = scmp.ne.s32.totalorder %s50, %s64
    %p66 = scmp.eq.s32.totalorder %s19, 0
    %p67 = por %p65, %p66
    %s69 = sadd.s32 %s68, 1
    %p72 = scmp.eq.s32.totalorder %s13, 1
    %p73 = scmp.ne.s32.totalorder %s68, %s70
    %p74 = scmp.eq.s32.totalorder %s13, 0
    %p75 = por %p73, %p74
    %p76 = scmp.ne.s32.totalorder %s68, %s70
    %p77 = scmp.eq.s32.totalorder %s18, 1
    %p78 = por %p76, %p77
    %p79 = scmp.ne.s32.totalorder %s70, %s71
    %p80 = scmp.eq.s32.totalorder %s18, 0
    %p81 = por %p79, %p80
    %p82 = scmp.ne.s32.totalorder %s70, %s71
    %p83 = scmp.eq.s32.totalorder %s19, 1
    %p84 = por %p82, %p83
    %p86 = scmp.ne.s32.totalorder %s71, %s85
    %p87 = scmp.eq.s32.totalorder %s19, 0
    %p88 = por %p86, %p87
    %s90 = sadd.s32 %s89, 1
    %p93 = scmp.eq.s32.totalorder %s13, 1
    %p94 = scmp.ne.s32.totalorder %s89, %s91
    %p95 = scmp.eq.s32.totalorder %s13, 0
    %p96 = por %p94, %p95
    %p97 = scmp.ne.s32.totalorder %s89, %s91
    %p98 = scmp.eq.s32.totalorder %s18, 1
    %p99 = por %p97, %p98
    %p100 = scmp.ne.s32.totalorder %s91, %s92
    %p101 = scmp.eq.s32.totalorder %s18, 0
    %p102 = por %p100, %p101
    %p103 = scmp.ne.s32.totalorder %s91, %s92
    %p104 = scmp.eq.s32.totalorder %s19, 1
    %p105 = por %p103, %p104
    %p107 = scmp.ne.s32.totalorder %s92, %s106
    %p108 = scmp.eq.s32.totalorder %s19, 0
    %p109 = por %p107, %p108
    %s111 = sadd.s32 %s110, 1
    %p114 = scmp.eq.s32.totalorder %s13, 1
    %p115 = scmp.ne.s32.totalorder %s110, %s112
    %p116 = scmp.eq.s32.totalorder %s13, 0
    %p117 = por %p115, %p116
    %p118 = scmp.ne.s32.totalorder %s110, %s112
    %p119 = scmp.eq.s32.totalorder %s18, 1
    %p120 = por %p118, %p119
    %p121 = scmp.ne.s32.totalorder %s112, %s113
    %p122 = scmp.eq.s32.totalorder %s18, 0
    %p123 = por %p121, %p122
    %p124 = scmp.ne.s32.totalorder %s112, %s113
    %p125 = scmp.eq.s32.totalorder %s19, 1
    %p126 = por %p124, %p125
    %p128 = scmp.ne.s32.totalorder %s113, %s127
    %p129 = scmp.eq.s32.totalorder %s19, 0
    %p130 = por %p128, %p129
    %s132 = sadd.s32 %s131, 1
    %p135 = scmp.eq.s32.totalorder %s13, 1
    %p136 = scmp.ne.s32.totalorder %s131, %s133
    %p137 = scmp.eq.s32.totalorder %s13, 0
    %p138 = por %p136, %p137
    %p139 = scmp.ne.s32.totalorder %s131, %s133
    %p140 = scmp.eq.s32.totalorder %s18, 1
    %p141 = por %p139, %p140
    %p142 = scmp.ne.s32.totalorder %s133, %s134
    %p143 = scmp.eq.s32.totalorder %s18, 0
    %p144 = por %p142, %p143
    %p145 = scmp.ne.s32.totalorder %s133, %s134
    %p146 = scmp.eq.s32.totalorder %s19, 1
    %p147 = por %p145, %p146
    %p149 = scmp.ne.s32.totalorder %s134, %s148
    %p150 = scmp.eq.s32.totalorder %s19, 0
    %p151 = por %p149, %p150
    %s153 = sadd.s32 %s152, 1
    %p156 = scmp.eq.s32.totalorder %s13, 1
    %p157 = scmp.ne.s32.totalorder %s152, %s154
    %p158 = scmp.eq.s32.totalorder %s13, 0
    %p159 = por %p157, %p158
    %p160 = scmp.ne.s32.totalorder %s152, %s154
    %p161 = scmp.eq.s32.totalorder %s18, 1
    %p162 = por %p160, %p161
    %p163 = scmp.ne.s32.totalorder %s154, %s155
    %p164 = scmp.eq.s32.totalorder %s18, 0
    %p165 = por %p163, %p164
    %p166 = scmp.ne.s32.totalorder %s154, %s155
    %p167 = scmp.eq.s32.totalorder %s19, 1
    %p168 = por %p166, %p167
    %p170 = scmp.ne.s32.totalorder %s155, %s169
    %p171 = scmp.eq.s32.totalorder %s19, 0
    %p172 = por %p170, %p171
    %s173 = ssub.s32 %s13, %s20
    %p174 = scmp.eq.s32.totalorder %s173, 0
    %s176 = sadd.s32 %s175, 1
    %s177 = scalar_select %p174, %s175, %s176
    %p180 = pneg %p174
    %p181 = scmp.eq.s32.totalorder %s13, 1
    %p182 = por %p180, %p181
    %p183 = scmp.ne.s32.totalorder %s175, %s178
    %p184 = scmp.eq.s32.totalorder %s13, 0
    %p185 = por %p183, %p184
    %p186 = scmp.ne.s32.totalorder %s175, %s178
    %p187 = scmp.eq.s32.totalorder %s18, 1
    %p188 = por %p186, %p187
    %p189 = scmp.ne.s32.totalorder %s178, %s179
    %p190 = scmp.eq.s32.totalorder %s18, 0
    %p191 = por %p189, %p190
    %p192 = scmp.ne.s32.totalorder %s178, %s179
    %p193 = scmp.eq.s32.totalorder %s19, 1
    %p194 = por %p192, %p193
    %p196 = scmp.ne.s32.totalorder %s179, %s195
    %p197 = scmp.eq.s32.totalorder %s19, 0
    %p198 = por %p196, %p197
    %p199 = scmp.le.s32.totalorder 1, %s13
    %p200 = scmp.lt.s32.totalorder %s13, 3
    %p201 = pnand %p199, %p200
    %p202 = pneg %p201
    // Predicated region
    $region9: #{tpu_custom_call.1} parent=5 // pred_check
      _
    $region10: #{tpu_custom_call.1} parent=5 // pred_check_branch
      %204 = sbr.rel (%p201) target = $region12
    $region11: #{tpu_custom_call.1} parent=5 // pred_region
      %s205 = ssub.s32 %s13, 1
      // Predicated region
      $region13: #{tpu_custom_call.1} parent=11 // pred_check
        %p206 = pneg %p60
      $region14: #{tpu_custom_call.1} parent=11 // pred_check_branch
        %208 = sbr.rel (%p206) target = $region16
      $region15: #{tpu_custom_call.1} parent=11 // pred_region
        _
      $region16: #{tpu_custom_call.1} parent=11 // pred_fallthru
        _
      // Predicated region
      $region17: #{tpu_custom_call.1} parent=11 // pred_check
        %p209 = pneg %p81
      $region18: #{tpu_custom_call.1} parent=11 // pred_check_branch
        %211 = sbr.rel (%p209) target = $region20
      $region19: #{tpu_custom_call.1} parent=11 // pred_region
        _
      $region20: #{tpu_custom_call.1} parent=11 // pred_fallthru
        _
      // Predicated region
      $region21: #{tpu_custom_call.1} parent=11 // pred_check
        %p212 = pneg %p102
      $region22: #{tpu_custom_call.1} parent=11 // pred_check_branch
        %214 = sbr.rel (%p212) target = $region24
      $region23: #{tpu_custom_call.1} parent=11 // pred_region
        _
      $region24: #{tpu_custom_call.1} parent=11 // pred_fallthru
        _
      // Predicated region
      $region25: #{tpu_custom_call.1} parent=11 // pred_check
        %p215 = pneg %p123
      $region26: #{tpu_custom_call.1} parent=11 // pred_check_branch
        %217 = sbr.rel (%p215) target = $region28
      $region27: #{tpu_custom_call.1} parent=11 // pred_region
        _
      $region28: #{tpu_custom_call.1} parent=11 // pred_fallthru
        _
      // Predicated region
      $region29: #{tpu_custom_call.1} parent=11 // pred_check
        %p218 = pneg %p144
      $region30: #{tpu_custom_call.1} parent=11 // pred_check_branch
        %220 = sbr.rel (%p218) target = $region32
      $region31: #{tpu_custom_call.1} parent=11 // pred_region
        _
      $region32: #{tpu_custom_call.1} parent=11 // pred_fallthru
        _
      // Predicated region
      $region33: #{tpu_custom_call.1} parent=11 // pred_check
        %p221 = pneg %p165
      $region34: #{tpu_custom_call.1} parent=11 // pred_check_branch
        %223 = sbr.rel (%p221) target = $region36
      $region35: #{tpu_custom_call.1} parent=11 // pred_region
        _
      $region36: #{tpu_custom_call.1} parent=11 // pred_fallthru
        _
    $region12: #{tpu_custom_call.1} parent=5 // pred_fallthru
      _
    %p224 = scmp.lt.s32.totalorder %s13, 2
    // Predicated region
    $region37: #{tpu_custom_call.1} parent=5 // pred_check
      %p225 = pneg %p224
    $region38: #{tpu_custom_call.1} parent=5 // pred_check_branch
      %227 = sbr.rel (%p225) target = $region40
    $region39: #{tpu_custom_call.1} parent=5 // pred_region
      // Predicated region
      $region41: #{tpu_custom_call.1} parent=39 // pred_check
        %p228 = pneg %p33
      $region42: #{tpu_custom_call.1} parent=39 // pred_check_branch
        %230 = sbr.rel (%p228) target = $region44
      $region43: #{tpu_custom_call.1} parent=39 // pred_region
        %p231 = scmp.lt.s32.totalorder %s13, 1
        %s232 = scalar_select %p231, %s13, 1
        %s233 = smul.addr %s232, 8
        %s234 = smul.addr %s233, 8
        %s235 = scalar_lea.vmem %s0, %s234
      $region44: #{tpu_custom_call.1} parent=39 // pred_fallthru
        _
    $region40: #{tpu_custom_call.1} parent=5 // pred_fallthru
      _
    %p236 = scmp.le.s32.totalorder 1, %s13
    %p237 = scmp.lt.s32.totalorder %s13, 3
    %p238 = pnand %p236, %p237
    %p239 = pneg %p238
    // Predicated region
    $region45: #{tpu_custom_call.1} parent=5 // pred_check
      _
    $region46: #{tpu_custom_call.1} parent=5 // pred_check_branch
      %241 = sbr.rel (%p238) target = $region48
    $region47: #{tpu_custom_call.1} parent=5 // pred_region
      %s242 = ssub.s32 %s13, 1
      %p243 = scmp.lt.s32.totalorder %s18, 1
      %s244 = scalar_select %p243, %s18, 1
      %s245 = smul.addr %s244, 8
      %s246 = smul.addr %s245, 8
      %s247 = scalar_lea.vmem %s0, %s246
      %p248 = pneg %p39
      %p249 = pneg %p36
      %p250 = pneg %p60
      %p251 = pneg %p57
      %p252 = pneg %p81
      %p253 = pneg %p78
      %p254 = pneg %p102
      %p255 = pneg %p99
      %p256 = pneg %p123
      %p257 = pneg %p120
      %p258 = pneg %p144
      %p259 = pneg %p141
      %p260 = pneg %p165
      %p261 = pneg %p162
      %p262 = pneg %p191
      %p263 = pneg %p188
      %p264 = scmp.lt.s32.totalorder %s18, 1
      %s265 = scalar_select %p264, %s18, 1
      %s266 = smul.addr %s265, 8
      %s267 = smul.addr %s266, 8
      %s268 = scalar_lea.vmem %s7, %s267
      %p269 = scmp.lt.s32.totalorder %s18, 1
      %s270 = scalar_select %p269, %s18, 1
      %s271 = smul.addr %s270, 8
      %s272 = smul.addr %s271, 8
      %s273 = scalar_lea.vmem %s0, %s272
      %p274 = scmp.lt.s32.totalorder %s18, 1
      %s275 = scalar_select %p274, %s18, 1
      %s276 = smul.addr %s275, 8
      %s277 = smul.addr %s276, 8
      %s278 = scalar_lea.vmem %s7, %s277
      %v280 = vld [vmem:[%s273] sm:$0xff]
      %v281 = vld [vmem:[%s273 + $0x8] sm:$0xff]
      %v282 = vld [vmem:[%s273 + $0x10] sm:$0xff]
      %v283 = vld [vmem:[%s273 + $0x18] sm:$0xff]
      %v284 = vld [vmem:[%s273 + $0x20] sm:$0xff]
      %v285 = vld [vmem:[%s273 + $0x28] sm:$0xff]
      %v286 = vld [vmem:[%s273 + $0x30] sm:$0xff]
      %v287 = vld [vmem:[%s273 + $0x38] sm:$0xff]
      %v288 = vmax.f32 %v280, 0.0
      %v289 = vmax.f32 %v281, 0.0
      %v290 = vmax.f32 %v282, 0.0
      %v291 = vmax.f32 %v283, 0.0
      %v292 = vmax.f32 %v284, 0.0
      %v293 = vmax.f32 %v285, 0.0
      %v294 = vmax.f32 %v286, 0.0
      %v295 = vmax.f32 %v287, 0.0
      %v296 = vpack.c.bf16 %v289, %v288
      %v297 = vpack.c.bf16 %v291, %v290
      %v298 = vpack.c.bf16 %v293, %v292
      %v299 = vpack.c.bf16 %v295, %v294
      %v300 = vld [vmem:[%s1] sm:$0xf]
      %v301 = vld [vmem:[%s1 + $0x4] sm:$0xf]
      %v302 = vld [vmem:[%s1 + $0x8] sm:$0xf]
      %v303 = vld [vmem:[%s1 + $0xc] sm:$0xf]
      %v304 = vld [vmem:[%s2] sm:$0x1]
      %v306 = vperm.slane %v304, 0
      %v312 = vunpack.c.l.b16 %v300
      %v313 = vunpack.c.l.b16 %v301
      %v314 = vunpack.c.l.b16 %v302
      %v315 = vunpack.c.l.b16 %v303
      %v316 = vpack.c.b16 %v313, %v312
      %v317 = vpack.c.b16 %v315, %v314
      %vm320 = vcmask 261120
      %v322 = vsel %vm320, %v296, 0
      %v325 = vsel %vm320, %v297, 0
      %v328 = vsel %vm320, %v298, 0
      %v331 = vsel %vm320, %v299, 0
      %333 = vmatpush.bf16.msra.mxu0 0
      %334 = vmatpush.bf16.msra.mxu0 0
      %335 = vmatpush.bf16.msra.mxu0 0
      %336 = vmatpush.bf16.msra.mxu0 0
      %337 = vmatpush.bf16.msra.mxu0 0
      %338 = vmatpush.bf16.msra.mxu0 0
      %339 = vmatpush.bf16.msra.mxu0 %v317
      %340 = vmatpush.bf16.msra.mxu0 %v316
      %341 = vmatmul.bf16.gmra.mxu0 %v322
      %v342 = vpop.f32.mrf.mxu0
      %v343 = vadd.f32 %v306, %v342
      %v344 = vpop.f32.mrf.mxu0
      %v345 = vadd.f32 %v306, %v344
      %346 = vmatmul.bf16.gmra.mxu0 %v325
      %v347 = vpop.f32.mrf.mxu0
      %v348 = vadd.f32 %v306, %v347
      %v349 = vpop.f32.mrf.mxu0
      %v350 = vadd.f32 %v306, %v349
      %351 = vmatmul.bf16.gmra.mxu0 %v328
      %v352 = vpop.f32.mrf.mxu0
      %v353 = vadd.f32 %v306, %v352
      %v354 = vpop.f32.mrf.mxu0
      %v355 = vadd.f32 %v306, %v354
      %356 = vmatmul.bf16.gmra.mxu0 %v331
      %v357 = vpop.f32.mrf.mxu0
      %v358 = vadd.f32 %v306, %v357
      %v359 = vpop.f32.mrf.mxu0
      %v360 = vadd.f32 %v306, %v359
      %361 = vdwg.mxu0
      %vm362 = vcmask 60416
      %363 = vst.msk [vmem:[#allocation2] sm:$0xf] %vm362, 0
      %364 = vst.msk [vmem:[#allocation2 + $0x4] sm:$0xf] %vm362, 0
      %365 = vst.msk [vmem:[#allocation2 + $0x8] sm:$0xf] %vm362, 0
      %366 = vst.msk [vmem:[#allocation2 + $0xc] sm:$0xf] %vm362, 0
      %367 = vst.msk [vmem:[#allocation2 + $0x10] sm:$0xf] %vm362, 0
      %368 = vst.msk [vmem:[#allocation2 + $0x14] sm:$0xf] %vm362, 0
      %369 = vst.msk [vmem:[#allocation2 + $0x18] sm:$0xf] %vm362, 0
      %370 = vst.msk [vmem:[#allocation2 + $0x1c] sm:$0xf] %vm362, 0
      %371 = vst.msk [vmem:[#allocation2 + $0x20] sm:$0xf] %vm362, 0
      %372 = vst.msk [vmem:[#allocation2 + $0x24] sm:$0xf] %vm362, 0
      %373 = vst.msk [vmem:[#allocation2 + $0x28] sm:$0xf] %vm362, 0
      %374 = vst.msk [vmem:[#allocation2 + $0x2c] sm:$0xf] %vm362, 0
      %vm375 = vcmask 58368
      %376 = vst.msk [vmem:[#allocation2 + $0x30] sm:$0x3] %vm375, 0
      %v377 = vmax.f32 %v343, 0.0
      %v378 = vmax.f32 %v345, 0.0
      %v379 = vmax.f32 %v348, 0.0
      %v380 = vmax.f32 %v350, 0.0
      %v381 = vmax.f32 %v353, 0.0
      %v382 = vmax.f32 %v355, 0.0
      %v383 = vmax.f32 %v358, 0.0
      %v384 = vmax.f32 %v360, 0.0
      %v385 = vpack.c.bf16 %v377, %v377
      %v386 = vpack.c.bf16 %v378, %v378
      %v387 = vpack.c.bf16 %v379, %v379
      %v388 = vpack.c.bf16 %v380, %v380
      %v389 = vpack.c.bf16 %v381, %v381
      %v390 = vpack.c.bf16 %v382, %v382
      %v391 = vpack.c.bf16 %v383, %v383
      %v392 = vpack.c.bf16 %v384, %v384
      %v394 = vshrl.u32 %v385, 16
      %v396 = vrot.slane %v394, 6
      %v397 = vshll.u32 %v385, 16
      %v399 = vrot.slane %v397, 7
      %v400 = vor.u32 %v396, %v399
      %v401 = vrot.slane %v400, 4
      %vm404 = vcmask 60417
      %vm405 = vsmask.f32 7942
      %vm406 = vmand %vm404, %vm405
      %v407 = vld [vmem:[#allocation2 + $0x4] sm:$0xe]
      %v408 = vsel %vm406, %v400, %v407
      %409 = vst [vmem:[#allocation2 + $0x4] sm:$0xe] %v408
      %vm410 = vcmask 58368
      %vm411 = vsmask.f32 1280
      %vm412 = vmand %vm410, %vm411
      %v413 = vld [vmem:[#allocation2 + $0x8] sm:$0x3]
      %v414 = vsel %vm412, %v401, %v413
      %415 = vst [vmem:[#allocation2 + $0x8] sm:$0x3] %v414
      %v417 = vshrl.u32 %v386, 16
      %v419 = vrot.slane %v417, 5
      %v420 = vshll.u32 %v386, 16
      %v422 = vrot.slane %v420, 6
      %v423 = vor.u32 %v419, %v422
      %v424 = vrot.slane %v423, 4
      %vm427 = vcmask 60418
      %vm428 = vsmask.f32 7946
      %vm429 = vmand %vm427, %vm428
      %v430 = vld [vmem:[#allocation2 + $0x8] sm:$0xc]
      %v431 = vsel %vm429, %v423, %v430
      %432 = vst [vmem:[#allocation2 + $0x8] sm:$0xc] %v431
      %vm433 = vcmask 59392
      %vm434 = vsmask.f32 2304
      %vm435 = vmand %vm433, %vm434
      %v436 = vld [vmem:[#allocation2 + $0xc] sm:$0x7]
      %v437 = vsel %vm435, %v424, %v436
      %438 = vst [vmem:[#allocation2 + $0xc] sm:$0x7] %v437
      %v440 = vshll.u32 %v387, 16
      %v442 = vrot.slane %v440, 5
      %v443 = vshrl.u32 %v387, 16
      %v445 = vrot.slane %v443, 4
      %v446 = vor.u32 %v445, %v442
      %v447 = vrot.slane %v446, 4
      %vm450 = vcmask 60419
      %vm451 = vsmask.f32 7950
      %vm452 = vmand %vm450, %vm451
      %v453 = vld [vmem:[#allocation2 + $0xc] sm:$0x8]
      %v454 = vsel %vm452, %v442, %v453
      %455 = vst [vmem:[#allocation2 + $0xc] sm:$0x8] %v454
      %vm456 = vcmask 60416
      %vm457 = vsmask.f32 3328
      %vm458 = vmand %vm456, %vm457
      %v459 = vld [vmem:[#allocation2 + $0x10] sm:$0xf]
      %v460 = vsel %vm458, %v447, %v459
      %461 = vst [vmem:[#allocation2 + $0x10] sm:$0xf] %v460
      %v463 = vshrl.u32 %v388, 16
      %v465 = vrot.slane %v463, 7
      %v466 = vshll.u32 %v388, 16
      %v468 = vor.u32 %v465, %v466
      %v469 = vrot.slane %v465, 4
      %vm472 = vsmask.f32 7938
      %vm473 = vmand %vm456, %vm472
      %v474 = vld [vmem:[#allocation2 + $0x14] sm:$0xf]
      %v475 = vsel %vm473, %v468, %v474
      %476 = vst [vmem:[#allocation2 + $0x14] sm:$0xf] %v475
      %vm477 = vcmask 57344
      %vm478 = vsmask.f32 256
      %vm479 = vmand %vm477, %vm478
      %v480 = vld [vmem:[#allocation2 + $0x18] sm:$0x1]
      %v481 = vsel %vm479, %v469, %v480
      %482 = vst [vmem:[#allocation2 + $0x18] sm:$0x1] %v481
      %v484 = vshrl.u32 %v389, 16
      %v486 = vrot.slane %v484, 6
      %v487 = vshll.u32 %v389, 16
      %v489 = vrot.slane %v487, 7
      %v490 = vor.u32 %v486, %v489
      %v491 = vrot.slane %v490, 4
      %v494 = vld [vmem:[#allocation2 + $0x18] sm:$0xe]
      %v495 = vsel %vm406, %v490, %v494
      %496 = vst [vmem:[#allocation2 + $0x18] sm:$0xe] %v495
      %v497 = vld [vmem:[#allocation2 + $0x1c] sm:$0x3]
      %v498 = vsel %vm412, %v491, %v497
      %499 = vst [vmem:[#allocation2 + $0x1c] sm:$0x3] %v498
      %v501 = vshrl.u32 %v390, 16
      %v503 = vrot.slane %v501, 5
      %v504 = vshll.u32 %v390, 16
      %v506 = vrot.slane %v504, 6
      %v507 = vor.u32 %v503, %v506
      %v508 = vrot.slane %v507, 4
      %v511 = vld [vmem:[#allocation2 + $0x1c] sm:$0xc]
      %v512 = vsel %vm429, %v507, %v511
      %513 = vst [vmem:[#allocation2 + $0x1c] sm:$0xc] %v512
      %v514 = vld [vmem:[#allocation2 + $0x20] sm:$0x7]
      %v515 = vsel %vm435, %v508, %v514
      %516 = vst [vmem:[#allocation2 + $0x20] sm:$0x7] %v515
      %v518 = vshll.u32 %v391, 16
      %v520 = vrot.slane %v518, 5
      %v521 = vshrl.u32 %v391, 16
      %v523 = vrot.slane %v521, 4
      %v524 = vor.u32 %v523, %v520
      %v525 = vrot.slane %v524, 4
      %v528 = vld [vmem:[#allocation2 + $0x20] sm:$0x8]
      %v529 = vsel %vm452, %v520, %v528
      %530 = vst [vmem:[#allocation2 + $0x20] sm:$0x8] %v529
      %v531 = vld [vmem:[#allocation2 + $0x24] sm:$0xf]
      %v532 = vsel %vm458, %v525, %v531
      %533 = vst [vmem:[#allocation2 + $0x24] sm:$0xf] %v532
      %v535 = vshrl.u32 %v392, 16
      %v537 = vrot.slane %v535, 7
      %v538 = vshll.u32 %v392, 16
      %v540 = vor.u32 %v537, %v538
      %v541 = vrot.slane %v537, 4
      %v544 = vld [vmem:[#allocation2 + $0x28] sm:$0xf]
      %v545 = vsel %vm473, %v540, %v544
      %546 = vst [vmem:[#allocation2 + $0x28] sm:$0xf] %v545
      %v547 = vld [vmem:[#allocation2 + $0x2c] sm:$0x1]
      %v548 = vsel %vm479, %v541, %v547
      %549 = vst [vmem:[#allocation2 + $0x2c] sm:$0x1] %v548
      %v550 = vld [vmem:[#allocation2] sm:$0xf]
      %v551 = vld [vmem:[#allocation2 + $0x4] sm:$0xf]
      %v552 = vld [vmem:[#allocation2 + $0x8] sm:$0xf]
      %v553 = vld [vmem:[#allocation2 + $0xc] sm:$0xf]
      %v554 = vld [vmem:[#allocation2 + $0x10] sm:$0xf]
      %v555 = vld [vmem:[#allocation2 + $0x14] sm:$0xf]
      %v556 = vld [vmem:[#allocation2 + $0x18] sm:$0xf]
      %v557 = vld [vmem:[#allocation2 + $0x1c] sm:$0xf]
      %v558 = vld [vmem:[#allocation2 + $0x20] sm:$0xf]
      %v559 = vld [vmem:[#allocation2 + $0x24] sm:$0xf]
      %v560 = vld [vmem:[#allocation2 + $0x28] sm:$0xf]
      %v561 = vld [vmem:[#allocation2 + $0x2c] sm:$0xf]
      %v562 = vld [vmem:[#allocation2 + $0x30] sm:$0x3]
      %v563 = vld [vmem:[%s3] sm:$0xf]
      %v577 = vunpack.c.l.b16 %v550
      %v578 = vunpack.c.l.b16 %v551
      %v579 = vunpack.c.l.b16 %v552
      %v580 = vunpack.c.l.b16 %v553
      %v581 = vunpack.c.l.b16 %v554
      %v582 = vunpack.c.l.b16 %v555
      %v583 = vunpack.c.l.b16 %v556
      %v584 = vunpack.c.l.b16 %v557
      %v585 = vunpack.c.l.b16 %v558
      %v586 = vunpack.c.l.b16 %v559
      %v587 = vunpack.c.l.b16 %v560
      %v588 = vunpack.c.l.b16 %v561
      %v589 = vunpack.c.l.b16 %v562
      %v590 = vpack.c.b16 %v578, %v577
      %v591 = vpack.c.b16 %v580, %v579
      %v592 = vpack.c.b16 %v582, %v581
      %v593 = vpack.c.b16 %v584, %v583
      %v594 = vpack.c.b16 %v586, %v585
      %v595 = vpack.c.b16 %v588, %v587
      %v596 = vpack.c.b16 %v589, %v589
      %vm597 = vcmask 64512
      %v599 = vsel %vm597, %v590, 0
      %v602 = vsel %vm597, %v591, 0
      %v605 = vsel %vm597, %v592, 0
      %v608 = vsel %vm597, %v593, 0
      %v611 = vsel %vm597, %v594, 0
      %v614 = vsel %vm597, %v595, 0
      %v617 = vsel %vm597, %v596, 0
      %vm619 = vcmask 1043456
      %v621 = vsel %vm619, %v563, 0
      %623 = vmatpush.bf16.msra.mxu0 0
      %624 = vmatpush.bf16.msra.mxu0 0
      %625 = vmatpush.bf16.msra.mxu0 0
      %626 = vmatpush.bf16.msra.mxu0 0
      %627 = vmatpush.bf16.msra.mxu0 0
      %628 = vmatpush.bf16.msra.mxu0 0
      %629 = vmatpush.bf16.msra.mxu0 0
      %630 = vmatpush.bf16.msra.mxu0 %v621
      %631 = vmatmul.bf16.gmra.mxu0 %v599
      %v632 = vpop.f32.mrf.mxu0
      %v633 = vadd.f32 0.0, %v632
      %v634 = vpop.f32.mrf.mxu0
      %v635 = vadd.f32 0.0, %v634
      %636 = vmatmul.bf16.gmra.mxu0 %v602
      %v637 = vpop.f32.mrf.mxu0
      %v638 = vadd.f32 0.0, %v637
      %v639 = vpop.f32.mrf.mxu0
      %v640 = vadd.f32 0.0, %v639
      %641 = vmatmul.bf16.gmra.mxu0 %v605
      %v642 = vpop.f32.mrf.mxu0
      %v643 = vadd.f32 0.0, %v642
      %v644 = vpop.f32.mrf.mxu0
      %v645 = vadd.f32 0.0, %v644
      %646 = vmatmul.bf16.gmra.mxu0 %v608
      %v647 = vpop.f32.mrf.mxu0
      %v648 = vadd.f32 0.0, %v647
      %v649 = vpop.f32.mrf.mxu0
      %v650 = vadd.f32 0.0, %v649
      %651 = vmatmul.bf16.gmra.mxu0 %v611
      %v652 = vpop.f32.mrf.mxu0
      %v653 = vadd.f32 0.0, %v652
      %v654 = vpop.f32.mrf.mxu0
      %v655 = vadd.f32 0.0, %v654
      %656 = vmatmul.bf16.gmra.mxu0 %v614
      %v657 = vpop.f32.mrf.mxu0
      %v658 = vpop.f32.mrf.mxu0
      %659 = vmatmul.bf16.gmra.mxu0 %v617
      %v660 = vpop.f32.mrf.mxu0
      %v661 = vpop.f32.mrf.mxu0
      %662 = vdwg.mxu0
      %v663 = vadd.f32 %v633, 0.0
      %v664 = vadd.f32 %v635, 0.0
      %v665 = vadd.f32 %v638, 0.0
      %v666 = vadd.f32 %v640, 0.0
      %v667 = vadd.f32 %v643, 0.0
      %v668 = vadd.f32 %v645, 0.0
      %v669 = vadd.f32 %v648, 0.0
      %v670 = vadd.f32 %v650, 0.0
      %v671 = vadd.f32 %v653, 0.0
      %v672 = vadd.f32 %v655, 0.0
      %s673 = scalar_lea.vmem %s3, 4
      %v674 = vld [vmem:[%s673] sm:$0xf]
      %v676 = vsel %vm619, %v674, 0
      %678 = vmatpush.bf16.msra.mxu0 0
      %679 = vmatpush.bf16.msra.mxu0 0
      %680 = vmatpush.bf16.msra.mxu0 0
      %681 = vmatpush.bf16.msra.mxu0 0
      %682 = vmatpush.bf16.msra.mxu0 0
      %683 = vmatpush.bf16.msra.mxu0 0
      %684 = vmatpush.bf16.msra.mxu0 0
      %685 = vmatpush.bf16.msra.mxu0 %v676
      %686 = vmatmul.bf16.gmra.mxu0 %v599
      %v687 = vpop.f32.mrf.mxu0
      %v688 = vadd.f32 0.0, %v687
      %v689 = vpop.f32.mrf.mxu0
      %v690 = vadd.f32 0.0, %v689
      %691 = vmatmul.bf16.gmra.mxu0 %v602
      %v692 = vpop.f32.mrf.mxu0
      %v693 = vadd.f32 0.0, %v692
      %v694 = vpop.f32.mrf.mxu0
      %v695 = vadd.f32 0.0, %v694
      %696 = vmatmul.bf16.gmra.mxu0 %v605
      %v697 = vpop.f32.mrf.mxu0
      %v698 = vadd.f32 0.0, %v697
      %v699 = vpop.f32.mrf.mxu0
      %v700 = vadd.f32 0.0, %v699
      %701 = vmatmul.bf16.gmra.mxu0 %v608
      %v702 = vpop.f32.mrf.mxu0
      %v703 = vadd.f32 0.0, %v702
      %v704 = vpop.f32.mrf.mxu0
      %v705 = vadd.f32 0.0, %v704
      %706 = vmatmul.bf16.gmra.mxu0 %v611
      %v707 = vpop.f32.mrf.mxu0
      %v708 = vadd.f32 0.0, %v707
      %v709 = vpop.f32.mrf.mxu0
      %v710 = vadd.f32 0.0, %v709
      %711 = vmatmul.bf16.gmra.mxu0 %v614
      %v712 = vpop.f32.mrf.mxu0
      %v713 = vpop.f32.mrf.mxu0
      %714 = vmatmul.bf16.gmra.mxu0 %v617
      %v715 = vpop.f32.mrf.mxu0
      %v716 = vpop.f32.mrf.mxu0
      %717 = vdwg.mxu0
      %vm728 = vcmask 1046528
      %v729 = vrot.slane %v688, 1
      %v730 = vrot.slane %v690, 1
      %v731 = vsel %vm728, %v729, %v730
      %v732 = vrot.slane %v693, 1
      %v733 = vsel %vm728, %v730, %v732
      %v734 = vrot.slane %v695, 1
      %v735 = vsel %vm728, %v732, %v734
      %v736 = vrot.slane %v698, 1
      %v737 = vsel %vm728, %v734, %v736
      %v738 = vrot.slane %v700, 1
      %v739 = vsel %vm728, %v736, %v738
      %v740 = vrot.slane %v703, 1
      %v741 = vsel %vm728, %v738, %v740
      %v742 = vrot.slane %v705, 1
      %v743 = vsel %vm728, %v740, %v742
      %v744 = vrot.slane %v708, 1
      %v745 = vsel %vm728, %v742, %v744
      %v746 = vrot.slane %v710, 1
      %v747 = vsel %vm728, %v744, %v746
      %v758 = vadd.f32 %v663, %v731
      %v759 = vadd.f32 %v664, %v733
      %v760 = vadd.f32 %v665, %v735
      %v761 = vadd.f32 %v666, %v737
      %v762 = vadd.f32 %v667, %v739
      %v763 = vadd.f32 %v668, %v741
      %v764 = vadd.f32 %v669, %v743
      %v765 = vadd.f32 %v670, %v745
      %v766 = vadd.f32 %v671, %v747
      %v767 = vadd.f32 %v672, %v746
      %s768 = scalar_lea.vmem %s3, 8
      %v769 = vld [vmem:[%s768] sm:$0xf]
      %v771 = vsel %vm619, %v769, 0
      %773 = vmatpush.bf16.msra.mxu0 0
      %774 = vmatpush.bf16.msra.mxu0 0
      %775 = vmatpush.bf16.msra.mxu0 0
      %776 = vmatpush.bf16.msra.mxu0 0
      %777 = vmatpush.bf16.msra.mxu0 0
      %778 = vmatpush.bf16.msra.mxu0 0
      %779 = vmatpush.bf16.msra.mxu0 0
      %780 = vmatpush.bf16.msra.mxu0 %v771
      %781 = vmatmul.bf16.gmra.mxu0 %v599
      %v782 = vpop.f32.mrf.mxu0
      %v783 = vadd.f32 0.0, %v782
      %v784 = vpop.f32.mrf.mxu0
      %v785 = vadd.f32 0.0, %v784
      %786 = vmatmul.bf16.gmra.mxu0 %v602
      %v787 = vpop.f32.mrf.mxu0
      %v788 = vadd.f32 0.0, %v787
      %v789 = vpop.f32.mrf.mxu0
      %v790 = vadd.f32 0.0, %v789
      %791 = vmatmul.bf16.gmra.mxu0 %v605
      %v792 = vpop.f32.mrf.mxu0
      %v793 = vadd.f32 0.0, %v792
      %v794 = vpop.f32.mrf.mxu0
      %v795 = vadd.f32 0.0, %v794
      %796 = vmatmul.bf16.gmra.mxu0 %v608
      %v797 = vpop.f32.mrf.mxu0
      %v798 = vadd.f32 0.0, %v797
      %v799 = vpop.f32.mrf.mxu0
      %v800 = vadd.f32 0.0, %v799
      %801 = vmatmul.bf16.gmra.mxu0 %v611
      %v802 = vpop.f32.mrf.mxu0
      %v803 = vadd.f32 0.0, %v802
      %v804 = vpop.f32.mrf.mxu0
      %v805 = vadd.f32 0.0, %v804
      %806 = vmatmul.bf16.gmra.mxu0 %v614
      %v807 = vpop.f32.mrf.mxu0
      %v808 = vpop.f32.mrf.mxu0
      %809 = vmatmul.bf16.gmra.mxu0 %v617
      %v810 = vpop.f32.mrf.mxu0
      %v811 = vpop.f32.mrf.mxu0
      %812 = vdwg.mxu0
      %vm823 = vcmask 1045504
      %v824 = vrot.slane %v783, 2
      %v825 = vrot.slane %v785, 2
      %v826 = vsel %vm823, %v824, %v825
      %v827 = vrot.slane %v788, 2
      %v828 = vsel %vm823, %v825, %v827
      %v829 = vrot.slane %v790, 2
      %v830 = vsel %vm823, %v827, %v829
      %v831 = vrot.slane %v793, 2
      %v832 = vsel %vm823, %v829, %v831
      %v833 = vrot.slane %v795, 2
      %v834 = vsel %vm823, %v831, %v833
      %v835 = vrot.slane %v798, 2
      %v836 = vsel %vm823, %v833, %v835
      %v837 = vrot.slane %v800, 2
      %v838 = vsel %vm823, %v835, %v837
      %v839 = vrot.slane %v803, 2
      %v840 = vsel %vm823, %v837, %v839
      %v841 = vrot.slane %v805, 2
      %v842 = vsel %vm823, %v839, %v841
      %v853 = vadd.f32 %v758, %v826
      %v854 = vadd.f32 %v759, %v828
      %v855 = vadd.f32 %v760, %v830
      %v856 = vadd.f32 %v761, %v832
      %v857 = vadd.f32 %v762, %v834
      %v858 = vadd.f32 %v763, %v836
      %v859 = vadd.f32 %v764, %v838
      %v860 = vadd.f32 %v765, %v840
      %v861 = vadd.f32 %v766, %v842
      %v862 = vadd.f32 %v767, %v841
      %s863 = scalar_lea.vmem %s3, 12
      %v864 = vld [vmem:[%s863] sm:$0xf]
      %v866 = vsel %vm619, %v864, 0
      %868 = vmatpush.bf16.msra.mxu0 0
      %869 = vmatpush.bf16.msra.mxu0 0
      %870 = vmatpush.bf16.msra.mxu0 0
      %871 = vmatpush.bf16.msra.mxu0 0
      %872 = vmatpush.bf16.msra.mxu0 0
      %873 = vmatpush.bf16.msra.mxu0 0
      %874 = vmatpush.bf16.msra.mxu0 0
      %875 = vmatpush.bf16.msra.mxu0 %v866
      %876 = vmatmul.bf16.gmra.mxu0 %v599
      %v877 = vpop.f32.mrf.mxu0
      %v878 = vpop.f32.mrf.mxu0
      %v879 = vadd.f32 0.0, %v878
      %880 = vmatmul.bf16.gmra.mxu0 %v602
      %v881 = vpop.f32.mrf.mxu0
      %v882 = vadd.f32 0.0, %v881
      %v883 = vpop.f32.mrf.mxu0
      %v884 = vadd.f32 0.0, %v883
      %885 = vmatmul.bf16.gmra.mxu0 %v605
      %v886 = vpop.f32.mrf.mxu0
      %v887 = vadd.f32 0.0, %v886
      %v888 = vpop.f32.mrf.mxu0
      %v889 = vadd.f32 0.0, %v888
      %890 = vmatmul.bf16.gmra.mxu0 %v608
      %v891 = vpop.f32.mrf.mxu0
      %v892 = vadd.f32 0.0, %v891
      %v893 = vpop.f32.mrf.mxu0
      %v894 = vadd.f32 0.0, %v893
      %895 = vmatmul.bf16.gmra.mxu0 %v611
      %v896 = vpop.f32.mrf.mxu0
      %v897 = vadd.f32 0.0, %v896
      %v898 = vpop.f32.mrf.mxu0
      %v899 = vadd.f32 0.0, %v898
      %900 = vmatmul.bf16.gmra.mxu0 %v614
      %v901 = vpop.f32.mrf.mxu0
      %v902 = vadd.f32 0.0, %v901
      %v903 = vpop.f32.mrf.mxu0
      %904 = vmatmul.bf16.gmra.mxu0 %v617
      %v905 = vpop.f32.mrf.mxu0
      %v906 = vpop.f32.mrf.mxu0
      %907 = vdwg.mxu0
      %v918 = vrot.slane %v879, 2
      %v919 = vrot.slane %v882, 2
      %v920 = vsel %vm823, %v918, %v919
      %v921 = vrot.slane %v884, 2
      %v922 = vsel %vm823, %v919, %v921
      %v923 = vrot.slane %v887, 2
      %v924 = vsel %vm823, %v921, %v923
      %v925 = vrot.slane %v889, 2
      %v926 = vsel %vm823, %v923, %v925
      %v927 = vrot.slane %v892, 2
      %v928 = vsel %vm823, %v925, %v927
      %v929 = vrot.slane %v894, 2
      %v930 = vsel %vm823, %v927, %v929
      %v931 = vrot.slane %v897, 2
      %v932 = vsel %vm823, %v929, %v931
      %v933 = vrot.slane %v899, 2
      %v934 = vsel %vm823, %v931, %v933
      %v935 = vrot.slane %v902, 2
      %v936 = vsel %vm823, %v933, %v935
      %v947 = vadd.f32 %v853, %v920
      %v948 = vadd.f32 %v854, %v922
      %v949 = vadd.f32 %v855, %v924
      %v950 = vadd.f32 %v856, %v926
      %v951 = vadd.f32 %v857, %v928
      %v952 = vadd.f32 %v858, %v930
      %v953 = vadd.f32 %v859, %v932
      %v954 = vadd.f32 %v860, %v934
      %v955 = vadd.f32 %v861, %v936
      %v956 = vadd.f32 %v862, %v935
      %s957 = scalar_lea.vmem %s3, 16
      %v958 = vld [vmem:[%s957] sm:$0xf]
      %v960 = vsel %vm619, %v958, 0
      %962 = vmatpush.bf16.msra.mxu0 0
      %963 = vmatpush.bf16.msra.mxu0 0
      %964 = vmatpush.bf16.msra.mxu0 0
      %965 = vmatpush.bf16.msra.mxu0 0
      %966 = vmatpush.bf16.msra.mxu0 0
      %967 = vmatpush.bf16.msra.mxu0 0
      %968 = vmatpush.bf16.msra.mxu0 0
      %969 = vmatpush.bf16.msra.mxu0 %v960
      %970 = vmatmul.bf16.gmra.mxu0 %v599
      %v971 = vpop.f32.mrf.mxu0
      %v972 = vpop.f32.mrf.mxu0
      %v973 = vadd.f32 0.0, %v972
      %974 = vmatmul.bf16.gmra.mxu0 %v602
      %v975 = vpop.f32.mrf.mxu0
      %v976 = vadd.f32 0.0, %v975
      %v977 = vpop.f32.mrf.mxu0
      %v978 = vadd.f32 0.0, %v977
      %979 = vmatmul.bf16.gmra.mxu0 %v605
      %v980 = vpop.f32.mrf.mxu0
      %v981 = vadd.f32 0.0, %v980
      %v982 = vpop.f32.mrf.mxu0
      %v983 = vadd.f32 0.0, %v982
      %984 = vmatmul.bf16.gmra.mxu0 %v608
      %v985 = vpop.f32.mrf.mxu0
      %v986 = vadd.f32 0.0, %v985
      %v987 = vpop.f32.mrf.mxu0
      %v988 = vadd.f32 0.0, %v987
      %989 = vmatmul.bf16.gmra.mxu0 %v611
      %v990 = vpop.f32.mrf.mxu0
      %v991 = vadd.f32 0.0, %v990
      %v992 = vpop.f32.mrf.mxu0
      %v993 = vadd.f32 0.0, %v992
      %994 = vmatmul.bf16.gmra.mxu0 %v614
      %v995 = vpop.f32.mrf.mxu0
      %v996 = vadd.f32 0.0, %v995
      %v997 = vpop.f32.mrf.mxu0
      %v998 = vadd.f32 0.0, %v997
      %999 = vmatmul.bf16.gmra.mxu0 %v617
      %v1000 = vpop.f32.mrf.mxu0
      %v1001 = vpop.f32.mrf.mxu0
      %1002 = vdwg.mxu0
      %vm1014 = vcmask 1044480
      %v1015 = vrot.slane %v973, 3
      %v1016 = vrot.slane %v976, 3
      %v1017 = vsel %vm1014, %v1015, %v1016
      %v1018 = vrot.slane %v978, 3
      %v1019 = vsel %vm1014, %v1016, %v1018
      %v1020 = vrot.slane %v981, 3
      %v1021 = vsel %vm1014, %v1018, %v1020
      %v1022 = vrot.slane %v983, 3
      %v1023 = vsel %vm1014, %v1020, %v1022
      %v1024 = vrot.slane %v986, 3
      %v1025 = vsel %vm1014, %v1022, %v1024
      %v1026 = vrot.slane %v988, 3
      %v1027 = vsel %vm1014, %v1024, %v1026
      %v1028 = vrot.slane %v991, 3
      %v1029 = vsel %vm1014, %v1026, %v1028
      %v1030 = vrot.slane %v993, 3
      %v1031 = vsel %vm1014, %v1028, %v1030
      %v1032 = vrot.slane %v996, 3
      %v1033 = vsel %vm1014, %v1030, %v1032
      %v1034 = vrot.slane %v998, 3
      %v1035 = vsel %vm1014, %v1032, %v1034
      %v1046 = vadd.f32 %v947, %v1017
      %v1047 = vadd.f32 %v948, %v1019
      %v1048 = vadd.f32 %v949, %v1021
      %v1049 = vadd.f32 %v950, %v1023
      %v1050 = vadd.f32 %v951, %v1025
      %v1051 = vadd.f32 %v952, %v1027
      %v1052 = vadd.f32 %v953, %v1029
      %v1053 = vadd.f32 %v954, %v1031
      %v1054 = vadd.f32 %v955, %v1033
      %v1055 = vadd.f32 %v956, %v1035
      %s1056 = scalar_lea.vmem %s3, 20
      %v1057 = vld [vmem:[%s1056] sm:$0xf]
      %v1059 = vsel %vm619, %v1057, 0
      %1061 = vmatpush.bf16.msra.mxu0 0
      %1062 = vmatpush.bf16.msra.mxu0 0
      %1063 = vmatpush.bf16.msra.mxu0 0
      %1064 = vmatpush.bf16.msra.mxu0 0
      %1065 = vmatpush.bf16.msra.mxu0 0
      %1066 = vmatpush.bf16.msra.mxu0 0
      %1067 = vmatpush.bf16.msra.mxu0 0
      %1068 = vmatpush.bf16.msra.mxu0 %v1059
      %1069 = vmatmul.bf16.gmra.mxu0 %v599
      %v1070 = vpop.f32.mrf.mxu0
      %v1071 = vpop.f32.mrf.mxu0
      %v1072 = vadd.f32 0.0, %v1071
      %1073 = vmatmul.bf16.gmra.mxu0 %v602
      %v1074 = vpop.f32.mrf.mxu0
      %v1075 = vadd.f32 0.0, %v1074
      %v1076 = vpop.f32.mrf.mxu0
      %v1077 = vadd.f32 0.0, %v1076
      %1078 = vmatmul.bf16.gmra.mxu0 %v605
      %v1079 = vpop.f32.mrf.mxu0
      %v1080 = vadd.f32 0.0, %v1079
      %v1081 = vpop.f32.mrf.mxu0
      %v1082 = vadd.f32 0.0, %v1081
      %1083 = vmatmul.bf16.gmra.mxu0 %v608
      %v1084 = vpop.f32.mrf.mxu0
      %v1085 = vadd.f32 0.0, %v1084
      %v1086 = vpop.f32.mrf.mxu0
      %v1087 = vadd.f32 0.0, %v1086
      %1088 = vmatmul.bf16.gmra.mxu0 %v611
      %v1089 = vpop.f32.mrf.mxu0
      %v1090 = vadd.f32 0.0, %v1089
      %v1091 = vpop.f32.mrf.mxu0
      %v1092 = vadd.f32 0.0, %v1091
      %1093 = vmatmul.bf16.gmra.mxu0 %v614
      %v1094 = vpop.f32.mrf.mxu0
      %v1095 = vadd.f32 0.0, %v1094
      %v1096 = vpop.f32.mrf.mxu0
      %v1097 = vadd.f32 0.0, %v1096
      %1098 = vmatmul.bf16.gmra.mxu0 %v617
      %v1099 = vpop.f32.mrf.mxu0
      %v1100 = vpop.f32.mrf.mxu0
      %1101 = vdwg.mxu0
      %v1113 = vrot.slane %v1072, 4
      %v1114 = vrot.slane %v1075, 4
      %v1115 = vsel %vm619, %v1113, %v1114
      %v1116 = vrot.slane %v1077, 4
      %v1117 = vsel %vm619, %v1114, %v1116
      %v1118 = vrot.slane %v1080, 4
      %v1119 = vsel %vm619, %v1116, %v1118
      %v1120 = vrot.slane %v1082, 4
      %v1121 = vsel %vm619, %v1118, %v1120
      %v1122 = vrot.slane %v1085, 4
      %v1123 = vsel %vm619, %v1120, %v1122
      %v1124 = vrot.slane %v1087, 4
      %v1125 = vsel %vm619, %v1122, %v1124
      %v1126 = vrot.slane %v1090, 4
      %v1127 = vsel %vm619, %v1124, %v1126
      %v1128 = vrot.slane %v1092, 4
      %v1129 = vsel %vm619, %v1126, %v1128
      %v1130 = vrot.slane %v1095, 4
      %v1131 = vsel %vm619, %v1128, %v1130
      %v1132 = vrot.slane %v1097, 4
      %v1133 = vsel %vm619, %v1130, %v1132
      %v1144 = vadd.f32 %v1046, %v1115
      %v1145 = vadd.f32 %v1047, %v1117
      %v1146 = vadd.f32 %v1048, %v1119
      %v1147 = vadd.f32 %v1049, %v1121
      %v1148 = vadd.f32 %v1050, %v1123
      %v1149 = vadd.f32 %v1051, %v1125
      %v1150 = vadd.f32 %v1052, %v1127
      %v1151 = vadd.f32 %v1053, %v1129
      %v1152 = vadd.f32 %v1054, %v1131
      %v1153 = vadd.f32 %v1055, %v1133
      %s1154 = scalar_lea.vmem %s3, 24
      %v1155 = vld [vmem:[%s1154] sm:$0xf]
      %v1157 = vsel %vm619, %v1155, 0
      %1159 = vmatpush.bf16.msra.mxu0 0
      %1160 = vmatpush.bf16.msra.mxu0 0
      %1161 = vmatpush.bf16.msra.mxu0 0
      %1162 = vmatpush.bf16.msra.mxu0 0
      %1163 = vmatpush.bf16.msra.mxu0 0
      %1164 = vmatpush.bf16.msra.mxu0 0
      %1165 = vmatpush.bf16.msra.mxu0 0
      %1166 = vmatpush.bf16.msra.mxu0 %v1157
      %1167 = vmatmul.bf16.gmra.mxu0 %v599
      %v1168 = vpop.f32.mrf.mxu0
      %v1169 = vpop.f32.mrf.mxu0
      %1170 = vmatmul.bf16.gmra.mxu0 %v602
      %v1171 = vpop.f32.mrf.mxu0
      %v1172 = vadd.f32 0.0, %v1171
      %v1173 = vpop.f32.mrf.mxu0
      %v1174 = vadd.f32 0.0, %v1173
      %1175 = vmatmul.bf16.gmra.mxu0 %v605
      %v1176 = vpop.f32.mrf.mxu0
      %v1177 = vadd.f32 0.0, %v1176
      %v1178 = vpop.f32.mrf.mxu0
      %v1179 = vadd.f32 0.0, %v1178
      %1180 = vmatmul.bf16.gmra.mxu0 %v608
      %v1181 = vpop.f32.mrf.mxu0
      %v1182 = vadd.f32 0.0, %v1181
      %v1183 = vpop.f32.mrf.mxu0
      %v1184 = vadd.f32 0.0, %v1183
      %1185 = vmatmul.bf16.gmra.mxu0 %v611
      %v1186 = vpop.f32.mrf.mxu0
      %v1187 = vadd.f32 0.0, %v1186
      %v1188 = vpop.f32.mrf.mxu0
      %v1189 = vadd.f32 0.0, %v1188
      %1190 = vmatmul.bf16.gmra.mxu0 %v614
      %v1191 = vpop.f32.mrf.mxu0
      %v1192 = vadd.f32 0.0, %v1191
      %v1193 = vpop.f32.mrf.mxu0
      %v1194 = vadd.f32 0.0, %v1193
      %1195 = vmatmul.bf16.gmra.mxu0 %v617
      %v1196 = vpop.f32.mrf.mxu0
      %v1197 = vadd.f32 0.0, %v1196
      %v1198 = vpop.f32.mrf.mxu0
      %1199 = vdwg.mxu0
      %v1211 = vrot.slane %v1172, 4
      %v1212 = vrot.slane %v1174, 4
      %v1213 = vsel %vm619, %v1211, %v1212
      %v1214 = vrot.slane %v1177, 4
      %v1215 = vsel %vm619, %v1212, %v1214
      %v1216 = vrot.slane %v1179, 4
      %v1217 = vsel %vm619, %v1214, %v1216
      %v1218 = vrot.slane %v1182, 4
      %v1219 = vsel %vm619, %v1216, %v1218
      %v1220 = vrot.slane %v1184, 4
      %v1221 = vsel %vm619, %v1218, %v1220
      %v1222 = vrot.slane %v1187, 4
      %v1223 = vsel %vm619, %v1220, %v1222
      %v1224 = vrot.slane %v1189, 4
      %v1225 = vsel %vm619, %v1222, %v1224
      %v1226 = vrot.slane %v1192, 4
      %v1227 = vsel %vm619, %v1224, %v1226
      %v1228 = vrot.slane %v1194, 4
      %v1229 = vsel %vm619, %v1226, %v1228
      %v1230 = vrot.slane %v1197, 4
      %v1231 = vsel %vm619, %v1228, %v1230
      %v1242 = vadd.f32 %v1144, %v1213
      %v1243 = vadd.f32 %v1145, %v1215
      %v1244 = vadd.f32 %v1146, %v1217
      %v1245 = vadd.f32 %v1147, %v1219
      %v1246 = vadd.f32 %v1148, %v1221
      %v1247 = vadd.f32 %v1149, %v1223
      %v1248 = vadd.f32 %v1150, %v1225
      %v1249 = vadd.f32 %v1151, %v1227
      %v1250 = vadd.f32 %v1152, %v1229
      %v1251 = vadd.f32 %v1153, %v1231
      %s1252 = scalar_lea.vmem %s3, 28
      %v1253 = vld [vmem:[%s1252] sm:$0xf]
      %v1255 = vsel %vm619, %v1253, 0
      %1257 = vmatpush.bf16.msra.mxu0 0
      %1258 = vmatpush.bf16.msra.mxu0 0
      %1259 = vmatpush.bf16.msra.mxu0 0
      %1260 = vmatpush.bf16.msra.mxu0 0
      %1261 = vmatpush.bf16.msra.mxu0 0
      %1262 = vmatpush.bf16.msra.mxu0 0
      %1263 = vmatpush.bf16.msra.mxu0 0
      %1264 = vmatpush.bf16.msra.mxu0 %v1255
      %1265 = vmatmul.bf16.gmra.mxu0 %v599
      %v1266 = vpop.f32.mrf.mxu0
      %v1267 = vpop.f32.mrf.mxu0
      %1268 = vmatmul.bf16.gmra.mxu0 %v602
      %v1269 = vpop.f32.mrf.mxu0
      %v1270 = vadd.f32 0.0, %v1269
      %v1271 = vpop.f32.mrf.mxu0
      %v1272 = vadd.f32 0.0, %v1271
      %1273 = vmatmul.bf16.gmra.mxu0 %v605
      %v1274 = vpop.f32.mrf.mxu0
      %v1275 = vadd.f32 0.0, %v1274
      %v1276 = vpop.f32.mrf.mxu0
      %v1277 = vadd.f32 0.0, %v1276
      %1278 = vmatmul.bf16.gmra.mxu0 %v608
      %v1279 = vpop.f32.mrf.mxu0
      %v1280 = vadd.f32 0.0, %v1279
      %v1281 = vpop.f32.mrf.mxu0
      %v1282 = vadd.f32 0.0, %v1281
      %1283 = vmatmul.bf16.gmra.mxu0 %v611
      %v1284 = vpop.f32.mrf.mxu0
      %v1285 = vadd.f32 0.0, %v1284
      %v1286 = vpop.f32.mrf.mxu0
      %v1287 = vadd.f32 0.0, %v1286
      %1288 = vmatmul.bf16.gmra.mxu0 %v614
      %v1289 = vpop.f32.mrf.mxu0
      %v1290 = vadd.f32 0.0, %v1289
      %v1291 = vpop.f32.mrf.mxu0
      %v1292 = vadd.f32 0.0, %v1291
      %1293 = vmatmul.bf16.gmra.mxu0 %v617
      %v1294 = vpop.f32.mrf.mxu0
      %v1295 = vadd.f32 0.0, %v1294
      %v1296 = vpop.f32.mrf.mxu0
      %1297 = vdwg.mxu0
      %vm1309 = vcmask 1042432
      %v1310 = vrot.slane %v1270, 5
      %v1311 = vrot.slane %v1272, 5
      %v1312 = vsel %vm1309, %v1310, %v1311
      %v1313 = vrot.slane %v1275, 5
      %v1314 = vsel %vm1309, %v1311, %v1313
      %v1315 = vrot.slane %v1277, 5
      %v1316 = vsel %vm1309, %v1313, %v1315
      %v1317 = vrot.slane %v1280, 5
      %v1318 = vsel %vm1309, %v1315, %v1317
      %v1319 = vrot.slane %v1282, 5
      %v1320 = vsel %vm1309, %v1317, %v1319
      %v1321 = vrot.slane %v1285, 5
      %v1322 = vsel %vm1309, %v1319, %v1321
      %v1323 = vrot.slane %v1287, 5
      %v1324 = vsel %vm1309, %v1321, %v1323
      %v1325 = vrot.slane %v1290, 5
      %v1326 = vsel %vm1309, %v1323, %v1325
      %v1327 = vrot.slane %v1292, 5
      %v1328 = vsel %vm1309, %v1325, %v1327
      %v1329 = vrot.slane %v1295, 5
      %v1330 = vsel %vm1309, %v1327, %v1329
      %v1341 = vadd.f32 %v1242, %v1312
      %v1342 = vadd.f32 %v1243, %v1314
      %v1343 = vadd.f32 %v1244, %v1316
      %v1344 = vadd.f32 %v1245, %v1318
      %v1345 = vadd.f32 %v1246, %v1320
      %v1346 = vadd.f32 %v1247, %v1322
      %v1347 = vadd.f32 %v1248, %v1324
      %v1348 = vadd.f32 %v1249, %v1326
      %v1349 = vadd.f32 %v1250, %v1328
      %v1350 = vadd.f32 %v1251, %v1330
      %s1351 = scalar_lea.vmem %s3, 32
      %v1352 = vld [vmem:[%s1351] sm:$0xf]
      %v1354 = vsel %vm619, %v1352, 0
      %1356 = vmatpush.bf16.msra.mxu0 0
      %1357 = vmatpush.bf16.msra.mxu0 0
      %1358 = vmatpush.bf16.msra.mxu0 0
      %1359 = vmatpush.bf16.msra.mxu0 0
      %1360 = vmatpush.bf16.msra.mxu0 0
      %1361 = vmatpush.bf16.msra.mxu0 0
      %1362 = vmatpush.bf16.msra.mxu0 0
      %1363 = vmatpush.bf16.msra.mxu0 %v1354
      %1364 = vmatmul.bf16.gmra.mxu0 %v599
      %v1365 = vpop.f32.mrf.mxu0
      %v1366 = vpop.f32.mrf.mxu0
      %1367 = vmatmul.bf16.gmra.mxu0 %v602
      %v1368 = vpop.f32.mrf.mxu0
      %v1369 = vadd.f32 0.0, %v1368
      %v1370 = vpop.f32.mrf.mxu0
      %v1371 = vadd.f32 0.0, %v1370
      %1372 = vmatmul.bf16.gmra.mxu0 %v605
      %v1373 = vpop.f32.mrf.mxu0
      %v1374 = vadd.f32 0.0, %v1373
      %v1375 = vpop.f32.mrf.mxu0
      %v1376 = vadd.f32 0.0, %v1375
      %1377 = vmatmul.bf16.gmra.mxu0 %v608
      %v1378 = vpop.f32.mrf.mxu0
      %v1379 = vadd.f32 0.0, %v1378
      %v1380 = vpop.f32.mrf.mxu0
      %v1381 = vadd.f32 0.0, %v1380
      %1382 = vmatmul.bf16.gmra.mxu0 %v611
      %v1383 = vpop.f32.mrf.mxu0
      %v1384 = vadd.f32 0.0, %v1383
      %v1385 = vpop.f32.mrf.mxu0
      %v1386 = vadd.f32 0.0, %v1385
      %1387 = vmatmul.bf16.gmra.mxu0 %v614
      %v1388 = vpop.f32.mrf.mxu0
      %v1389 = vadd.f32 0.0, %v1388
      %v1390 = vpop.f32.mrf.mxu0
      %v1391 = vadd.f32 0.0, %v1390
      %1392 = vmatmul.bf16.gmra.mxu0 %v617
      %v1393 = vpop.f32.mrf.mxu0
      %v1394 = vadd.f32 0.0, %v1393
      %v1395 = vpop.f32.mrf.mxu0
      %1396 = vdwg.mxu0
      %vm1408 = vcmask 1041408
      %v1409 = vrot.slane %v1369, 6
      %v1410 = vrot.slane %v1371, 6
      %v1411 = vsel %vm1408, %v1409, %v1410
      %v1412 = vrot.slane %v1374, 6
      %v1413 = vsel %vm1408, %v1410, %v1412
      %v1414 = vrot.slane %v1376, 6
      %v1415 = vsel %vm1408, %v1412, %v1414
      %v1416 = vrot.slane %v1379, 6
      %v1417 = vsel %vm1408, %v1414, %v1416
      %v1418 = vrot.slane %v1381, 6
      %v1419 = vsel %vm1408, %v1416, %v1418
      %v1420 = vrot.slane %v1384, 6
      %v1421 = vsel %vm1408, %v1418, %v1420
      %v1422 = vrot.slane %v1386, 6
      %v1423 = vsel %vm1408, %v1420, %v1422
      %v1424 = vrot.slane %v1389, 6
      %v1425 = vsel %vm1408, %v1422, %v1424
      %v1426 = vrot.slane %v1391, 6
      %v1427 = vsel %vm1408, %v1424, %v1426
      %v1428 = vrot.slane %v1394, 6
      %v1429 = vsel %vm1408, %v1426, %v1428
      %v1440 = vadd.f32 %v1341, %v1411
      %v1441 = vadd.f32 %v1342, %v1413
      %v1442 = vadd.f32 %v1343, %v1415
      %v1443 = vadd.f32 %v1344, %v1417
      %v1444 = vadd.f32 %v1345, %v1419
      %v1445 = vadd.f32 %v1346, %v1421
      %v1446 = vadd.f32 %v1347, %v1423
      %v1447 = vadd.f32 %v1348, %v1425
      %v1448 = vadd.f32 %v1349, %v1427
      %v1449 = vadd.f32 %v1350, %v1429
      %v1450 = vld [vmem:[%s4] sm:$0x1]
      %v1452 = vperm.slane %v1450, 0
      %v1454 = vadd.f32 %v343, %v1452
      %v1455 = vadd.f32 %v345, %v1452
      %v1456 = vadd.f32 %v348, %v1452
      %v1457 = vadd.f32 %v350, %v1452
      %v1458 = vadd.f32 %v353, %v1452
      %v1459 = vadd.f32 %v355, %v1452
      %v1460 = vadd.f32 %v358, %v1452
      %v1461 = vadd.f32 %v360, %v1452
      %v1462 = vadd.f32 %v1440, %v1454
      %v1463 = vmax.f32 %v1462, 0.0
      %v1464 = vpack.c.bf16 %v1463, %v1463
      %1465 = vst.msk [vmem:[#allocation3] sm:$0xf] %vm362, %v1464
      %v1467 = vrot.slane %v1455, 6
      %v1469 = vadd.f32 %v1441, %v1467
      %v1470 = vadd.f32 %v1442, %v1467
      %v1471 = vmax.f32 %v1469, 0.0
      %v1472 = vmax.f32 %v1470, 0.0
      %v1473 = vpack.c.bf16 %v1471, %v1471
      %v1474 = vpack.c.bf16 %v1472, %v1472
      %vm1477 = vcmask 1042432
      %vm1478 = vcmask 1046532
      %vm1479 = vmor %vm1477, %vm1478
      %v1480 = vrot.slane %v1473, 5
      %v1481 = vrot.slane %v1480, 4
      %v1482 = vrot.slane %v1474, 5
      %v1483 = vsel %vm1479, %v1481, %v1482
      %1485 = vst.msk [vmem:[#allocation3 + $0x4] sm:$0xf] %vm362, %v1483
      %v1487 = vrot.slane %v1456, 4
      %v1489 = vadd.f32 %v1442, %v1487
      %v1490 = vadd.f32 %v1443, %v1487
      %v1491 = vmax.f32 %v1489, 0.0
      %v1492 = vmax.f32 %v1490, 0.0
      %v1493 = vpack.c.bf16 %v1491, %v1491
      %v1494 = vpack.c.bf16 %v1492, %v1492
      %vm1497 = vcmask 1041408
      %vm1498 = vcmask 1045508
      %vm1499 = vmor %vm1497, %vm1498
      %v1500 = vrot.slane %v1493, 6
      %v1501 = vrot.slane %v1500, 4
      %v1502 = vrot.slane %v1494, 6
      %v1503 = vsel %vm1499, %v1501, %v1502
      %1505 = vst.msk [vmem:[#allocation3 + $0x8] sm:$0xf] %vm362, %v1503
      %v1507 = vrot.slane %v1457, 2
      %v1509 = vadd.f32 %v1443, %v1507
      %v1510 = vadd.f32 %v1444, %v1507
      %v1511 = vmax.f32 %v1509, 0.0
      %v1512 = vmax.f32 %v1510, 0.0
      %v1513 = vpack.c.bf16 %v1511, %v1511
      %v1514 = vpack.c.bf16 %v1512, %v1512
      %vm1517 = vcmask 1040384
      %vm1518 = vcmask 1044484
      %vm1519 = vmor %vm1517, %vm1518
      %v1520 = vrot.slane %v1513, 7
      %v1521 = vrot.slane %v1520, 4
      %v1522 = vrot.slane %v1514, 7
      %v1523 = vsel %vm1519, %v1521, %v1522
      %1525 = vst.msk [vmem:[#allocation3 + $0xc] sm:$0xf] %vm362, %v1523
      %v1526 = vadd.f32 %v1445, %v1458
      %v1527 = vmax.f32 %v1526, 0.0
      %v1528 = vpack.c.bf16 %v1527, %v1527
      %1529 = vst.msk [vmem:[#allocation3 + $0x10] sm:$0xf] %vm362, %v1528
      %v1531 = vrot.slane %v1459, 6
      %v1533 = vadd.f32 %v1446, %v1531
      %v1534 = vadd.f32 %v1447, %v1531
      %v1535 = vmax.f32 %v1533, 0.0
      %v1536 = vmax.f32 %v1534, 0.0
      %v1537 = vpack.c.bf16 %v1535, %v1535
      %v1538 = vpack.c.bf16 %v1536, %v1536
      %v1541 = vrot.slane %v1537, 5
      %v1542 = vrot.slane %v1541, 4
      %v1543 = vrot.slane %v1538, 5
      %v1544 = vsel %vm1479, %v1542, %v1543
      %1546 = vst.msk [vmem:[#allocation3 + $0x14] sm:$0xf] %vm362, %v1544
      %v1548 = vrot.slane %v1460, 4
      %v1550 = vadd.f32 %v1447, %v1548
      %v1551 = vadd.f32 %v1448, %v1548
      %v1552 = vmax.f32 %v1550, 0.0
      %v1553 = vmax.f32 %v1551, 0.0
      %v1554 = vpack.c.bf16 %v1552, %v1552
      %v1555 = vpack.c.bf16 %v1553, %v1553
      %v1558 = vrot.slane %v1554, 6
      %v1559 = vrot.slane %v1558, 4
      %v1560 = vrot.slane %v1555, 6
      %v1561 = vsel %vm1499, %v1559, %v1560
      %1563 = vst.msk [vmem:[#allocation3 + $0x18] sm:$0xf] %vm362, %v1561
      %v1565 = vrot.slane %v1461, 2
      %v1567 = vadd.f32 %v1448, %v1565
      %v1568 = vadd.f32 %v1449, %v1565
      %v1569 = vmax.f32 %v1567, 0.0
      %v1570 = vmax.f32 %v1568, 0.0
      %v1571 = vpack.c.bf16 %v1569, %v1569
      %v1572 = vpack.c.bf16 %v1570, %v1570
      %v1575 = vrot.slane %v1571, 7
      %v1576 = vrot.slane %v1575, 4
      %v1577 = vrot.slane %v1572, 7
      %v1578 = vsel %vm1519, %v1576, %v1577
      %1580 = vst.msk [vmem:[#allocation3 + $0x1c] sm:$0xf] %vm362, %v1578
      %v1581 = vld [vmem:[#allocation3] sm:$0xf]
      %v1582 = vld [vmem:[#allocation3 + $0x4] sm:$0xf]
      %v1583 = vld [vmem:[#allocation3 + $0x8] sm:$0xf]
      %v1584 = vld [vmem:[#allocation3 + $0xc] sm:$0xf]
      %v1585 = vld [vmem:[#allocation3 + $0x10] sm:$0xf]
      %v1586 = vld [vmem:[#allocation3 + $0x14] sm:$0xf]
      %v1587 = vld [vmem:[#allocation3 + $0x18] sm:$0xf]
      %v1588 = vld [vmem:[#allocation3 + $0x1c] sm:$0xf]
      %v1589 = vld [vmem:[%s5] sm:$0xf]
      %v1590 = vld [vmem:[%s6] sm:$0x1]
      %v1592 = vperm.slane %v1590, 0
      %v1602 = vunpack.c.l.b16 %v1581
      %v1603 = vunpack.c.l.b16 %v1582
      %v1604 = vunpack.c.l.b16 %v1583
      %v1605 = vunpack.c.l.b16 %v1584
      %v1606 = vunpack.c.l.b16 %v1585
      %v1607 = vunpack.c.l.b16 %v1586
      %v1608 = vunpack.c.l.b16 %v1587
      %v1609 = vunpack.c.l.b16 %v1588
      %v1610 = vpack.c.b16 %v1603, %v1602
      %v1611 = vpack.c.b16 %v1605, %v1604
      %v1612 = vpack.c.b16 %v1607, %v1606
      %v1613 = vpack.c.b16 %v1609, %v1608
      %v1615 = vsel %vm597, %v1610, 0
      %v1618 = vsel %vm597, %v1611, 0
      %v1621 = vsel %vm597, %v1612, 0
      %v1624 = vsel %vm597, %v1613, 0
      %v1627 = vsel %vm619, %v1589, 0
      %1629 = vmatpush.bf16.msra.mxu0 0
      %1630 = vmatpush.bf16.msra.mxu0 0
      %1631 = vmatpush.bf16.msra.mxu0 0
      %1632 = vmatpush.bf16.msra.mxu0 0
      %1633 = vmatpush.bf16.msra.mxu0 0
      %1634 = vmatpush.bf16.msra.mxu0 0
      %1635 = vmatpush.bf16.msra.mxu0 0
      %1636 = vmatpush.bf16.msra.mxu0 %v1627
      %1637 = vmatmul.bf16.gmra.mxu0 %v1615
      %v1638 = vpop.f32.mrf.mxu0
      %v1639 = vadd.f32 %v1592, %v1638
      %v1640 = vpop.f32.mrf.mxu0
      %v1641 = vadd.f32 %v1592, %v1640
      %1642 = vmatmul.bf16.gmra.mxu0 %v1618
      %v1643 = vpop.f32.mrf.mxu0
      %v1644 = vadd.f32 %v1592, %v1643
      %v1645 = vpop.f32.mrf.mxu0
      %v1646 = vadd.f32 %v1592, %v1645
      %1647 = vmatmul.bf16.gmra.mxu0 %v1621
      %v1648 = vpop.f32.mrf.mxu0
      %v1649 = vadd.f32 %v1592, %v1648
      %v1650 = vpop.f32.mrf.mxu0
      %v1651 = vadd.f32 %v1592, %v1650
      %1652 = vmatmul.bf16.gmra.mxu0 %v1624
      %v1653 = vpop.f32.mrf.mxu0
      %v1654 = vadd.f32 %v1592, %v1653
      %v1655 = vpop.f32.mrf.mxu0
      %v1656 = vadd.f32 %v1592, %v1655
      %1657 = vdwg.mxu0
      %v1658 = vld [vmem:[%s273] sm:$0xff]
      %v1659 = vld [vmem:[%s273 + $0x8] sm:$0xff]
      %v1660 = vld [vmem:[%s273 + $0x10] sm:$0xff]
      %v1661 = vld [vmem:[%s273 + $0x18] sm:$0xff]
      %v1662 = vld [vmem:[%s273 + $0x20] sm:$0xff]
      %v1663 = vld [vmem:[%s273 + $0x28] sm:$0xff]
      %v1664 = vld [vmem:[%s273 + $0x30] sm:$0xff]
      %v1665 = vld [vmem:[%s273 + $0x38] sm:$0xff]
      %v1666 = vadd.f32 %v1639, %v1658
      %v1667 = vadd.f32 %v1641, %v1659
      %v1668 = vadd.f32 %v1644, %v1660
      %v1669 = vadd.f32 %v1646, %v1661
      %v1670 = vadd.f32 %v1649, %v1662
      %v1671 = vadd.f32 %v1651, %v1663
      %v1672 = vadd.f32 %v1654, %v1664
      %v1673 = vadd.f32 %v1656, %v1665
      %1674 = vst.msk [vmem:[%s278] sm:$0xff] %vm320, %v1666
      %1675 = vst.msk [vmem:[%s278 + $0x8] sm:$0xff] %vm320, %v1667
      %1676 = vst.msk [vmem:[%s278 + $0x10] sm:$0xff] %vm320, %v1668
      %1677 = vst.msk [vmem:[%s278 + $0x18] sm:$0xff] %vm320, %v1669
      %1678 = vst.msk [vmem:[%s278 + $0x20] sm:$0xff] %vm320, %v1670
      %1679 = vst.msk [vmem:[%s278 + $0x28] sm:$0xff] %vm320, %v1671
      %1680 = vst.msk [vmem:[%s278 + $0x30] sm:$0xff] %vm320, %v1672
      %1681 = vst.msk [vmem:[%s278 + $0x38] sm:$0xff] %vm320, %v1673
      %p1682 = scmp.lt.s32.totalorder %s18, 1
      %s1683 = scalar_select %p1682, %s18, 1
      %s1684 = smul.addr %s1683, 8
      %s1685 = smul.addr %s1684, 8
      %s1686 = scalar_lea.vmem %s7, %s1685
      // Predicated region
      $region49: #{tpu_custom_call.1} parent=47 // pred_check
        %p1687 = pneg %p188
      $region50: #{tpu_custom_call.1} parent=47 // pred_check_branch
        %1689 = sbr.rel (%p1687) target = $region52
      $region51: #{tpu_custom_call.1} parent=47 // pred_region
        _
      $region52: #{tpu_custom_call.1} parent=47 // pred_fallthru
        _
    $region48: #{tpu_custom_call.1} parent=5 // pred_fallthru
      _
    %p1690 = scmp.le.s32.totalorder 2, %s13
    // Predicated region
    $region53: #{tpu_custom_call.1} parent=5 // pred_check
      %p1691 = pneg %p1690
    $region54: #{tpu_custom_call.1} parent=5 // pred_check_branch
      %1693 = sbr.rel (%p1691) target = $region56
    $region55: #{tpu_custom_call.1} parent=5 // pred_region
      %s1694 = ssub.s32 %s13, 2
      // Predicated region
      $region57: #{tpu_custom_call.1} parent=55 // pred_check
        %p1695 = pneg %p194
      $region58: #{tpu_custom_call.1} parent=55 // pred_check_branch
        %1697 = sbr.rel (%p1695) target = $region60
      $region59: #{tpu_custom_call.1} parent=55 // pred_region
        %p1698 = scmp.lt.s32.totalorder %s19, 1
        %s1699 = scalar_select %p1698, %s19, 1
        %s1700 = smul.addr %s1699, 8
        %s1701 = smul.addr %s1700, 8
        %s1702 = scalar_lea.vmem %s7, %s1701
      $region60: #{tpu_custom_call.1} parent=55 // pred_fallthru
        _
    $region56: #{tpu_custom_call.1} parent=5 // pred_fallthru
      _
  $region6: #{tpu_custom_call.1} parent=0 // loop_footer
    %s17 = sadd.s32 1, %s13
  $region7: #{tpu_custom_call.1} parent=0 // loop_footer_branch
    %12 = sbr.rel target = $region3
  $region8: #{tpu_custom_call.1} parent=0 // loop_exit
    _

</llo_original>
